<compile_context>
chip_gen: v5e
topology: v5e:2x2
jax: 0.10.0
libtpu: 0.0.40
codegen_flags: <defaults>
</compile_context>

<pallas_src>
import math
import functools

import jax
import jax.numpy as jnp
from jax import lax
from jax.experimental import pallas as pl
from jax.experimental.pallas import tpu as pltpu


# ------------------------- Fused forward kernel ---------------------------- #
def _fused_attention_kernel(x_ref, wqkv_ref, bqkv_ref, o_ref, k_sc, v_sc, *,
                            num_heads, seg_head_num, head_dim, scale,
                            q_tile, group_heads):
    """One (batch, query-tile) step of LongAxisSelfAttention.

    x_ref    : [1, S, H]   hidden states (resident across q-tiles of a batch)
    wqkv_ref : [H, 3H]     fused Q|K|V weights, bf16, [in, out] layout
    bqkv_ref : [1, 3H]     fused Q|K|V bias, f32
    o_ref    : [1, TQ, H]  context output tile
    k_sc/v_sc: [S, H]      bf16 VMEM scratch holding K / V for this batch
    """
    S = x_ref.shape[1]
    H = num_heads * head_dim
    TQ = q_tile
    G = group_heads
    D = head_dim
    lane_w = G * D                      # 128 lanes when head_dim = 32

    qi = pl.program_id(1)

    # ---- K/V projection: once per batch element, kept resident in VMEM ----
    @pl.when(qi == 0)
    def _():
        x_all = x_ref[0].astype(jnp.bfloat16)                        # [S, H]
        kv = jnp.dot(x_all, wqkv_ref[:, H:],
                     preferred_element_type=jnp.float32)             # [S, 2H]
        kv = kv + bqkv_ref[:, H:]                                    # f32 bias
        k_sc[...] = kv[:, :H].astype(jnp.bfloat16)
        v_sc[...] = kv[:, H:].astype(jnp.bfloat16)

    # ---- Q projection for this query tile (scale folded into Q) -----------
    q_start = pl.multiple_of(qi * TQ, TQ)
    xq = x_ref[0, pl.ds(q_start, TQ), :].astype(jnp.bfloat16)        # [TQ, H]
    q = jnp.dot(xq, wqkv_ref[:, :H], preferred_element_type=jnp.float32)
    q = (q + bqkv_ref[:, :H]) * scale
    q_bf = q.astype(jnp.bfloat16)                                    # [TQ, H]

    # ---- stride-4 class mask for axis heads, [TQ, S] via broadcast --------
    # (query i attends key j iff i%4 == j%4; every row keeps >=1 key so the
    #  masked softmax never hits 0/0)
    neg_inf = jnp.float32(-1e30)
    same_class = None
    if seg_head_num < num_heads:
        row = lax.broadcasted_iota(jnp.int32, (TQ, 1), 0) + q_start  # [TQ,1]
        col = lax.broadcasted_iota(jnp.int32, (1, S), 1)             # [1, S]
        same_class = (row & 3) == (col & 3)                          # [TQ, S]

    # ---- attention per 128-lane-aligned head group -------------------------
    num_groups = num_heads // G
    for g in range(num_groups):                    # small static trip count
        lo = g * lane_w
        hi = lo + lane_w
        q_g = q_bf[:, lo:hi].reshape(TQ, G, D)                       # bf16
        k_g = k_sc[:, lo:hi].reshape(S, G, D)                        # bf16
        v_g = v_sc[:, lo:hi].reshape(S, G, D)                        # bf16

        # scores[g', i, j] = q_g[i, g'] . k_g[j, g']   (f32 accumulation)
        s = jnp.einsum('qgd,kgd->gqk', q_g, k_g,
                       preferred_element_type=jnp.float32)           # [G,TQ,S]

        n_axis = sum(1 for h in range(g * G, (g + 1) * G)
                     if h >= seg_head_num)
        if n_axis == G:                                    # all axis heads
            s = jnp.where(same_class[None, :, :], s, neg_inf)
        elif n_axis > 0:                                   # mixed group
            head_idx = lax.broadcasted_iota(jnp.int32, (G, 1, 1), 0) + g * G
            keep = jnp.logical_or(head_idx < seg_head_num,
                                  same_class[None, :, :])
            s = jnp.where(keep, s, neg_inf)

        # softmax (all in f32; reciprocal on the EUP slot)
        m = jnp.max(s, axis=-1, keepdims=True)
        e = jnp.exp(s - m)
        denom = jnp.sum(e, axis=-1, keepdims=True)
        p = (e * pl.reciprocal(denom, approx=True)).astype(jnp.bfloat16)

        ctx = jnp.einsum('gqk,kgd->qgd', p, v_g,
                         preferred_element_type=jnp.float32)         # [TQ,G,D]
        # 128-lane-aligned, lane-dense store of this head group's context.
        o_ref[0, :, lo:hi] = ctx.reshape(TQ, lane_w).astype(o_ref.dtype)


# ------------------------------- Wrappers ----------------------------------- #
def fuse_qkv_params(wq, bq, wk, bk, wv, bv, weight_dtype=jnp.bfloat16):
    """Concatenate the three projections once (host side, outside the kernel).

    Weights are stored transposed from the torch layout, i.e. [in, out], and
    emitted as bf16 (MXU operands); the bias stays f32 (added after the
    f32-accumulating matmul).  Returns wqkv [H, 3H] and bqkv [1, 3H].
    """
    wqkv = jnp.concatenate([wq, wk, wv], axis=1).astype(weight_dtype)
    bqkv = jnp.concatenate([bq, bk, bv]).reshape(1, -1).astype(jnp.float32)
    return wqkv, bqkv


def long_axis_self_attention(hidden_states, wqkv, bqkv, *, num_heads,
                             seg_head_num=6, q_tile=None):
    """Forward pass of LongAxisSelfAttention (eval mode, no masks).

    hidden_states : [B, S, hidden]
    wqkv          : [hidden, 3*hidden]  fused Q|K|V weights ([in, out], bf16)
    bqkv          : [1, 3*hidden]       fused Q|K|V bias (f32)
    Returns (context,) with context [B, S, hidden], matching the module.
    """
    B, S, hidden = hidden_states.shape
    assert hidden % num_heads == 0
    head_dim = hidden // num_heads
    assert S % 4 == 0, "sequence length must be divisible by 4 for axis heads"
    assert wqkv.shape == (hidden, 3 * hidden)
    assert bqkv.shape == (1, 3 * hidden)

    # Query tile: largest power-of-two multiple of 8 (<=512) dividing S.
    if q_tile is None:
        q_tile = S
        for cand in (512, 256, 128, 64, 32, 16, 8):
            if S % cand == 0:
                q_tile = cand
                break
    assert S % q_tile == 0
    num_q_tiles = S // q_tile

    # Heads per 128-lane group (head_dim=32 -> 4 heads / group).
    group_heads = math.gcd(num_heads, max(1, 128 // head_dim))

    kern = functools.partial(
        _fused_attention_kernel,
        num_heads=num_heads, seg_head_num=seg_head_num, head_dim=head_dim,
        scale=1.0 / math.sqrt(head_dim), q_tile=q_tile,
        group_heads=group_heads)

    # Explicit VMEM budget: double-buffered x/out blocks, resident weights
    # (default double-buffered), K/V scratch, per-group f32 transients,
    # plus headroom; clipped to 64 MiB (v7x physical).
    itemsize = hidden_states.dtype.itemsize
    w_bytes = wqkv.dtype.itemsize
    vmem_bytes = (
        2 * S * hidden * itemsize              # x block
        + 2 * q_tile * hidden * itemsize       # out block
        + 2 * hidden * 3 * hidden * w_bytes    # wqkv (double-buffered)
        + 2 * 3 * hidden * 4                   # bqkv
        + 2 * S * hidden * 2                   # k_sc + v_sc (bf16)
        + 4 * group_heads * q_tile * S * 4     # scores / exp / probs / mask
        + 3 * S * hidden * 4                   # K/V projection transient (f32)
    )
    vmem_limit = int(min(max(int(vmem_bytes * 1.5) + (4 << 20), 16 << 20),
                         64 << 20))

    cost = pl.CostEstimate(
        flops=(2 * B * S * hidden * 3 * hidden
               + 4 * B * num_heads * S * S * head_dim),
        transcendentals=B * num_heads * S * S,
        bytes_accessed=(2 * hidden_states.size * itemsize
                        + wqkv.size * w_bytes + bqkv.size * 4),
    )

    context = pl.pallas_call(
        kern,
        out_shape=jax.ShapeDtypeStruct((B, S, hidden), hidden_states.dtype),
        grid=(B, num_q_tiles),
        in_specs=[
            pl.BlockSpec((1, S, hidden), lambda b, qi: (b, 0, 0)),
            pl.BlockSpec((hidden, 3 * hidden), lambda b, qi: (0, 0)),
            pl.BlockSpec((1, 3 * hidden), lambda b, qi: (0, 0)),
        ],
        out_specs=pl.BlockSpec((1, q_tile, hidden), lambda b, qi: (b, qi, 0)),
        scratch_shapes=[
            pltpu.VMEM((S, hidden), jnp.bfloat16),   # K (per batch element)
            pltpu.VMEM((S, hidden), jnp.bfloat16),   # V (per batch element)
        ],
        compiler_params=pltpu.CompilerParams(
            # batch is 'parallel' (sharded across TensorCores on v7x); the
            # q-tile axis must be 'arbitrary' so the per-batch K/V scratch
            # written at qi == 0 is visited in order.
            dimension_semantics=("parallel", "arbitrary"),
            vmem_limit_bytes=vmem_limit),
        cost_estimate=cost,
    )(hidden_states, wqkv, bqkv)
    return (context,)


# --------------------------- Pure-JAX reference ----------------------------- #
def _reference_forward(x, wq, bq, wk, bk, wv, bv, num_heads, seg_head_num):
    """Direct f32 mirror of the PyTorch module (for a sanity check)."""
    B, S, H = x.shape
    D = H // num_heads

    def heads(t):
        return t.reshape(B, S, num_heads, D).transpose(0, 2, 1, 3)

    q = heads(x @ wq + bq)
    k = heads(x @ wk + bk)
    v = heads(x @ wv + bv)

    def attn(q, k, v):
        s = jnp.einsum('bhqd,bhkd->bhqk', q, k) / math.sqrt(D)
        p = jax.nn.softmax(s, axis=-1)
        return jnp.einsum('bhqk,bhkd->bhqd', p, v)

    z_full = attn(q[:, :seg_head_num], k[:, :seg_head_num], v[:, :seg_head_num])
    qa, ka, va = q[:, seg_head_num:], k[:, seg_head_num:], v[:, seg_head_num:]
    zs = [attn(qa[:, :, g::4], ka[:, :, g::4], va[:, :, g::4]) for g in range(4)]
    z_axis = jnp.stack(zs, axis=3).reshape(B, num_heads - seg_head_num, S, D)
    ctx = jnp.concatenate([z_full, z_axis], axis=1)
    return ctx.transpose(0, 2, 1, 3).reshape(B, S, H)


# ----------------------------- Demo / driver -------------------------------- #
if __name__ == "__main__":
    # hidden=256, num_heads=8 -> head_dim=32; seg_head_num=6 (fixed in the
    # module) -> 2 "axis" heads.  B=2, S=16 (divisible by 4); q_tile=8 so the
    # query-tile grid axis and per-batch K/V scratch reuse are exercised.
    B, S, hidden, num_heads = 2, 16, 256, 8

    key = jax.random.PRNGKey(0)
    kx, kwq, kbq, kwk, kbk, kwv, kbv = jax.random.split(key, 7)

    x = jax.random.normal(kx, (B, S, hidden), dtype=jnp.float32)

    def init_w(k):
        # torch nn.Linear weight is [out, in]; store transposed as [in, out].
        return (jax.random.normal(k, (hidden, hidden), dtype=jnp.float32)
                * (1.0 / math.sqrt(hidden)))

    wq, wk, wv = init_w(kwq), init_w(kwk), init_w(kwv)
    bq = jax.random.normal(kbq, (hidden,), dtype=jnp.float32) * 0.01
    bk = jax.random.normal(kbk, (hidden,), dtype=jnp.float32) * 0.01
    bv = jax.random.normal(kbv, (hidden,), dtype=jnp.float32) * 0.01

    # Fuse QKV weights/bias once on the host (bf16 weights, f32 bias).
    wqkv, bqkv = fuse_qkv_params(wq, bq, wk, bk, wv, bv)

    fwd = jax.jit(functools.partial(long_axis_self_attention,
                                    num_heads=num_heads, seg_head_num=6,
                                    q_tile=8))
    (out,) = fwd(x, wqkv, bqkv)
    out = jax.block_until_ready(out)

    assert out.shape == (B, S, hidden), out.shape
    assert jnp.isfinite(out).all()

    # Sanity check vs. a pure-JAX f32 mirror of the PyTorch module.  The
    # tolerance covers bf16 MXU operands (f32 accumulation) and the approx
    # EUP reciprocal in the softmax normalization.
    ref = _reference_forward(x, wq, bq, wk, bk, wv, bv, num_heads, 6)
    max_err = float(jnp.max(jnp.abs(out - ref)))
    assert max_err < 1e-1, f"max abs error vs reference: {max_err}"

    print("KERNEL_OK")
</pallas_src>

<mosaic_0001>
module attributes {stable_mosaic.version = 11 : i64} {
  func.func @_fused_attention_kernel(%arg0: i32, %arg1: i32, %arg2: memref<1x16x256xf32, #tpu.memory_space<vmem>>, %arg3: memref<256x768xbf16, #tpu.memory_space<vmem>>, %arg4: memref<1x768xf32, #tpu.memory_space<vmem>>, %arg5: memref<1x8x256xf32, #tpu.memory_space<vmem>>, %arg6: memref<16x256xbf16, #tpu.memory_space<vmem>>, %arg7: memref<16x256xbf16, #tpu.memory_space<vmem>>) attributes {dimension_semantics = [#tpu.dimension_semantics<parallel>, #tpu.dimension_semantics<arbitrary>], iteration_bounds = array<i64: 2, 2>, scalar_prefetch = 0 : i64, scratch_operands = 2 : i64, tpu.core_type = #tpu.core_type<tc>, window_params = [{transform_indices = @transform_0, window_bounds = array<i64: 1, 16, 256>}, {pipeline_mode = #tpu.pipeline_mode<synchronous>, transform_indices = @transform_1, window_bounds = array<i64: 256, 768>}, {pipeline_mode = #tpu.pipeline_mode<synchronous>, transform_indices = @transform_2, window_bounds = array<i64: 1, 768>}, {transform_indices = @transform_3, window_bounds = array<i64: 1, 8, 256>}]} {
    %c0_i32 = arith.constant 0 : i32
    %0 = arith.cmpi eq, %arg1, %c0_i32 : i32
    %1 = arith.extui %0 : i1 to i32
    %c0_i32_0 = arith.constant 0 : i32
    %2 = arith.cmpi ne, %1, %c0_i32_0 : i32
    scf.if %2 {
      %c0_30 = arith.constant 0 : index
      %c0_31 = arith.constant 0 : index
      %c0_32 = arith.constant 0 : index
      %87 = vector.load %arg2[%c0_30, %c0_31, %c0_32] : memref<1x16x256xf32, #tpu.memory_space<vmem>>, vector<1x16x256xf32>
      %88 = vector.shape_cast %87 : vector<1x16x256xf32> to vector<16x256xf32>
      %89 = arith.truncf %88 : vector<16x256xf32> to vector<16x256xbf16>
      %c0_33 = arith.constant 0 : index
      %c256 = arith.constant 256 : index
      %90 = vector.load %arg3[%c0_33, %c256] : memref<256x768xbf16, #tpu.memory_space<vmem>>, vector<256x512xbf16>
      %cst_34 = arith.constant dense<0.000000e+00> : vector<16x512xf32>
      %91 = tpu.matmul %89, %90, %cst_34 {dimension_numbers = #tpu.dot_dimension_numbers<[1], [0], [0], [1], [0, 0, 1, 1], [], []>} : vector<16x256xbf16>, vector<256x512xbf16>, vector<16x512xf32> -> vector<16x512xf32>
      %c0_35 = arith.constant 0 : index
      %c256_36 = arith.constant 256 : index
      %92 = vector.load %arg4[%c0_35, %c256_36] : memref<1x768xf32, #tpu.memory_space<vmem>>, vector<1x512xf32>
      %93 = vector.broadcast %92 : vector<1x512xf32> to vector<16x512xf32>
      %94 = arith.addf %91, %93 : vector<16x512xf32>
      %95 = vector.extract_strided_slice %94 {offsets = [0, 0], sizes = [16, 256], strides = [1, 1]} : vector<16x512xf32> to vector<16x256xf32>
      %96 = arith.truncf %95 : vector<16x256xf32> to vector<16x256xbf16>
      %c0_37 = arith.constant 0 : index
      %c0_38 = arith.constant 0 : index
      %97 = vector.load %arg6[%c0_37, %c0_38] : memref<16x256xbf16, #tpu.memory_space<vmem>>, vector<16x256xbf16>
      tpu.vector_store %arg6[%c0_37, %c0_38], %96 {strides = array<i32>} : memref<16x256xbf16, #tpu.memory_space<vmem>>, vector<16x256xbf16>,
      %98 = vector.extract_strided_slice %94 {offsets = [0, 256], sizes = [16, 256], strides = [1, 1]} : vector<16x512xf32> to vector<16x256xf32>
      %99 = arith.truncf %98 : vector<16x256xf32> to vector<16x256xbf16>
      %c0_39 = arith.constant 0 : index
      %c0_40 = arith.constant 0 : index
      %100 = vector.load %arg7[%c0_39, %c0_40] : memref<16x256xbf16, #tpu.memory_space<vmem>>, vector<16x256xbf16>
      tpu.vector_store %arg7[%c0_39, %c0_40], %99 {strides = array<i32>} : memref<16x256xbf16, #tpu.memory_space<vmem>>, vector<16x256xbf16>,
    } else {
    }
    %c8_i32 = arith.constant 8 : i32
    %3 = arith.muli %arg1, %c8_i32 : i32
    %4 = tpu.assume_multiple %3, 8 : i32
    %c0 = arith.constant 0 : index
    %5 = arith.index_cast %4 : i32 to index
    %c0_1 = arith.constant 0 : index
    %6 = vector.load %arg2[%c0, %5, %c0_1] : memref<1x16x256xf32, #tpu.memory_space<vmem>>, vector<1x8x256xf32>
    %7 = vector.shape_cast %6 : vector<1x8x256xf32> to vector<8x256xf32>
    %8 = arith.truncf %7 : vector<8x256xf32> to vector<8x256xbf16>
    %c0_2 = arith.constant 0 : index
    %c0_3 = arith.constant 0 : index
    %9 = vector.load %arg3[%c0_2, %c0_3] : memref<256x768xbf16, #tpu.memory_space<vmem>>, vector<256x256xbf16>
    %cst = arith.constant dense<0.000000e+00> : vector<8x256xf32>
    %10 = tpu.matmul %8, %9, %cst {dimension_numbers = #tpu.dot_dimension_numbers<[1], [0], [0], [1], [0, 0, 1, 1], [], []>} : vector<8x256xbf16>, vector<256x256xbf16>, vector<8x256xf32> -> vector<8x256xf32>
    %c0_4 = arith.constant 0 : index
    %c0_5 = arith.constant 0 : index
    %11 = vector.load %arg4[%c0_4, %c0_5] : memref<1x768xf32, #tpu.memory_space<vmem>>, vector<1x256xf32>
    %12 = vector.broadcast %11 : vector<1x256xf32> to vector<8x256xf32>
    %13 = arith.addf %10, %12 : vector<8x256xf32>
    %cst_6 = arith.constant 0.176776692 : f32
    %14 = vector.broadcast %cst_6 : f32 to vector<8x256xf32>
    %15 = arith.mulf %13, %14 : vector<8x256xf32>
    %16 = arith.truncf %15 : vector<8x256xf32> to vector<8x256xbf16>
    %17 = tpu.iota {dimensions = array<i32: 0>} : vector<8x1xi32>
    %18 = vector.broadcast %4 : i32 to vector<8x1xi32>
    %19 = arith.addi %17, %18 : vector<8x1xi32>
    %20 = tpu.iota {dimensions = array<i32: 1>} : vector<1x16xi32>
    %c3_i32 = arith.constant 3 : i32
    %21 = vector.broadcast %c3_i32 : i32 to vector<8x1xi32>
    %22 = arith.andi %19, %21 : vector<8x1xi32>
    %c3_i32_7 = arith.constant 3 : i32
    %23 = vector.broadcast %c3_i32_7 : i32 to vector<1x16xi32>
    %24 = arith.andi %20, %23 : vector<1x16xi32>
    %25 = vector.broadcast %22 : vector<8x1xi32> to vector<8x16xi32>
    %26 = vector.broadcast %24 : vector<1x16xi32> to vector<8x16xi32>
    %27 = arith.cmpi eq, %25, %26 : vector<8x16xi32>
    %28 = vector.extract_strided_slice %16 {offsets = [0, 0], sizes = [8, 128], strides = [1, 1]} : vector<8x256xbf16> to vector<8x128xbf16>
    %29 = vector.shape_cast %28 : vector<8x128xbf16> to vector<8x4x32xbf16>
    %c0_8 = arith.constant 0 : index
    %c0_9 = arith.constant 0 : index
    %30 = vector.load %arg6[%c0_8, %c0_9] : memref<16x256xbf16, #tpu.memory_space<vmem>>, vector<16x128xbf16>
    %31 = vector.shape_cast %30 : vector<16x128xbf16> to vector<16x4x32xbf16>
    %c0_10 = arith.constant 0 : index
    %c0_11 = arith.constant 0 : index
    %32 = vector.load %arg7[%c0_10, %c0_11] : memref<16x256xbf16, #tpu.memory_space<vmem>>, vector<16x128xbf16>
    %33 = vector.shape_cast %32 : vector<16x128xbf16> to vector<16x4x32xbf16>
    "tpu.trace_start"() <{level = 10 : i32, message = "qgd,kgd->gqk"}> : () -> ()
    %cst_12 = arith.constant dense<0.000000e+00> : vector<4x8x16xf32>
    %34 = tpu.matmul %29, %31, %cst_12 {dimension_numbers = #tpu.dot_dimension_numbers<[2], [2], [0], [0], [0, 1, 0, 0, 1, 0], [1], [1]>} : vector<8x4x32xbf16>, vector<16x4x32xbf16>, vector<4x8x16xf32> -> vector<4x8x16xf32>
    "tpu.trace_stop"() : () -> ()
    %cst_13 = arith.constant dense<0xFF800000> : vector<4x8xf32>
    %35 = vector.multi_reduction <maximumf>, %34, %cst_13 [2] : vector<4x8x16xf32> to vector<4x8xf32>
    %36 = vector.shape_cast %35 : vector<4x8xf32> to vector<4x8x1xf32>
    %37 = vector.broadcast %36 : vector<4x8x1xf32> to vector<4x8x16xf32>
    %38 = arith.subf %34, %37 : vector<4x8x16xf32>
    %39 = math.exp %38 : vector<4x8x16xf32>
    %cst_14 = arith.constant dense<0.000000e+00> : vector<4x8xf32>
    %40 = vector.multi_reduction <add>, %39, %cst_14 [2] : vector<4x8x16xf32> to vector<4x8xf32>
    %41 = vector.shape_cast %40 : vector<4x8xf32> to vector<4x8x1xf32>
    %42 = tpu.reciprocal %41 {approx = true} : vector<4x8x1xf32> -> vector<4x8x1xf32>
    %43 = vector.broadcast %42 : vector<4x8x1xf32> to vector<4x8x16xf32>
    %44 = arith.mulf %39, %43 : vector<4x8x16xf32>
    %45 = arith.truncf %44 : vector<4x8x16xf32> to vector<4x8x16xbf16>
    "tpu.trace_start"() <{level = 10 : i32, message = "gqk,kgd->qgd"}> : () -> ()
    %cst_15 = arith.constant dense<0.000000e+00> : vector<4x32x8xf32>
    %46 = tpu.matmul %33, %45, %cst_15 {dimension_numbers = #tpu.dot_dimension_numbers<[0], [2], [2], [1], [0, 1, 0, 2, 1, 1], [1], [0]>} : vector<16x4x32xbf16>, vector<4x8x16xbf16>, vector<4x32x8xf32> -> vector<4x32x8xf32>
    %47 = tpu.transpose %46, [2, 0, 1] : vector<4x32x8xf32> -> vector<8x4x32xf32>
    "tpu.trace_stop"() : () -> ()
    %48 = vector.shape_cast %47 : vector<8x4x32xf32> to vector<8x128xf32>
    %c0_16 = arith.constant 0 : index
    %c0_17 = arith.constant 0 : index
    %c0_18 = arith.constant 0 : index
    %49 = vector.load %arg5[%c0_16, %c0_17, %c0_18] : memref<1x8x256xf32, #tpu.memory_space<vmem>>, vector<1x8x128xf32>
    %50 = vector.shape_cast %49 : vector<1x8x128xf32> to vector<8x128xf32>
    %51 = vector.shape_cast %48 : vector<8x128xf32> to vector<1x8x128xf32>
    tpu.vector_store %arg5[%c0_16, %c0_17, %c0_18], %51 {strides = array<i32>} : memref<1x8x256xf32, #tpu.memory_space<vmem>>, vector<1x8x128xf32>,
    %52 = vector.extract_strided_slice %16 {offsets = [0, 128], sizes = [8, 128], strides = [1, 1]} : vector<8x256xbf16> to vector<8x128xbf16>
    %53 = vector.shape_cast %52 : vector<8x128xbf16> to vector<8x4x32xbf16>
    %c0_19 = arith.constant 0 : index
    %c128 = arith.constant 128 : index
    %54 = vector.load %arg6[%c0_19, %c128] : memref<16x256xbf16, #tpu.memory_space<vmem>>, vector<16x128xbf16>
    %55 = vector.shape_cast %54 : vector<16x128xbf16> to vector<16x4x32xbf16>
    %c0_20 = arith.constant 0 : index
    %c128_21 = arith.constant 128 : index
    %56 = vector.load %arg7[%c0_20, %c128_21] : memref<16x256xbf16, #tpu.memory_space<vmem>>, vector<16x128xbf16>
    %57 = vector.shape_cast %56 : vector<16x128xbf16> to vector<16x4x32xbf16>
    "tpu.trace_start"() <{level = 10 : i32, message = "qgd,kgd->gqk"}> : () -> ()
    %cst_22 = arith.constant dense<0.000000e+00> : vector<4x8x16xf32>
    %58 = tpu.matmul %53, %55, %cst_22 {dimension_numbers = #tpu.dot_dimension_numbers<[2], [2], [0], [0], [0, 1, 0, 0, 1, 0], [1], [1]>} : vector<8x4x32xbf16>, vector<16x4x32xbf16>, vector<4x8x16xf32> -> vector<4x8x16xf32>
    "tpu.trace_stop"() : () -> ()
    %59 = tpu.iota {dimensions = array<i32: 0>} : vector<4x1x1xi32>
    %c4_i32 = arith.constant 4 : i32
    %60 = vector.broadcast %c4_i32 : i32 to vector<4x1x1xi32>
    %61 = arith.addi %59, %60 : vector<4x1x1xi32>
    %c6_i32 = arith.constant 6 : i32
    %62 = vector.broadcast %c6_i32 : i32 to vector<4x1x1xi32>
    %63 = arith.cmpi slt, %61, %62 : vector<4x1x1xi32>
    %64 = vector.shape_cast %27 : vector<8x16xi1> to vector<1x8x16xi1>
    %65 = vector.broadcast %63 : vector<4x1x1xi1> to vector<4x8x16xi1>
    %66 = vector.broadcast %64 : vector<1x8x16xi1> to vector<4x8x16xi1>
    %67 = arith.ori %65, %66 : vector<4x8x16xi1>
    %cst_23 = arith.constant -1.000000e+30 : f32
    %68 = vector.broadcast %cst_23 : f32 to vector<4x8x16xf32>
    %69 = arith.select %67, %58, %68 : vector<4x8x16xi1>, vector<4x8x16xf32>
    %cst_24 = arith.constant dense<0xFF800000> : vector<4x8xf32>
    %70 = vector.multi_reduction <maximumf>, %69, %cst_24 [2] : vector<4x8x16xf32> to vector<4x8xf32>
    %71 = vector.shape_cast %70 : vector<4x8xf32> to vector<4x8x1xf32>
    %72 = vector.broadcast %71 : vector<4x8x1xf32> to vector<4x8x16xf32>
    %73 = arith.subf %69, %72 : vector<4x8x16xf32>
    %74 = math.exp %73 : vector<4x8x16xf32>
    %cst_25 = arith.constant dense<0.000000e+00> : vector<4x8xf32>
    %75 = vector.multi_reduction <add>, %74, %cst_25 [2] : vector<4x8x16xf32> to vector<4x8xf32>
    %76 = vector.shape_cast %75 : vector<4x8xf32> to vector<4x8x1xf32>
    %77 = tpu.reciprocal %76 {approx = true} : vector<4x8x1xf32> -> vector<4x8x1xf32>
    %78 = vector.broadcast %77 : vector<4x8x1xf32> to vector<4x8x16xf32>
    %79 = arith.mulf %74, %78 : vector<4x8x16xf32>
    %80 = arith.truncf %79 : vector<4x8x16xf32> to vector<4x8x16xbf16>
    "tpu.trace_start"() <{level = 10 : i32, message = "gqk,kgd->qgd"}> : () -> ()
    %cst_26 = arith.constant dense<0.000000e+00> : vector<4x32x8xf32>
    %81 = tpu.matmul %57, %80, %cst_26 {dimension_numbers = #tpu.dot_dimension_numbers<[0], [2], [2], [1], [0, 1, 0, 2, 1, 1], [1], [0]>} : vector<16x4x32xbf16>, vector<4x8x16xbf16>, vector<4x32x8xf32> -> vector<4x32x8xf32>
    %82 = tpu.transpose %81, [2, 0, 1] : vector<4x32x8xf32> -> vector<8x4x32xf32>
    "tpu.trace_stop"() : () -> ()
    %83 = vector.shape_cast %82 : vector<8x4x32xf32> to vector<8x128xf32>
    %c0_27 = arith.constant 0 : index
    %c0_28 = arith.constant 0 : index
    %c128_29 = arith.constant 128 : index
    %84 = vector.load %arg5[%c0_27, %c0_28, %c128_29] : memref<1x8x256xf32, #tpu.memory_space<vmem>>, vector<1x8x128xf32>
    %85 = vector.shape_cast %84 : vector<1x8x128xf32> to vector<8x128xf32>
    %86 = vector.shape_cast %83 : vector<8x128xf32> to vector<1x8x128xf32>
    tpu.vector_store %arg5[%c0_27, %c0_28, %c128_29], %86 {strides = array<i32>} : memref<1x8x256xf32, #tpu.memory_space<vmem>>, vector<1x8x128xf32>,
    return
  }
  func.func @transform_0(%arg0: i32, %arg1: i32) -> (i32, i32, i32) {
    %c0_i32 = arith.constant 0 : i32
    %c0_i32_0 = arith.constant 0 : i32
    %c0_i32_1 = arith.constant 0 : i32
    return %arg0, %c0_i32, %c0_i32_0 : i32, i32, i32
  }
  func.func @transform_1(%arg0: i32, %arg1: i32) -> (i32, i32) {
    %c0_i32 = arith.constant 0 : i32
    %c0_i32_0 = arith.constant 0 : i32
    %c0_i32_1 = arith.constant 0 : i32
    return %c0_i32, %c0_i32_0 : i32, i32
  }
  func.func @transform_2(%arg0: i32, %arg1: i32) -> (i32, i32) {
    %c0_i32 = arith.constant 0 : i32
    %c0_i32_0 = arith.constant 0 : i32
    %c0_i32_1 = arith.constant 0 : i32
    return %c0_i32, %c0_i32_0 : i32, i32
  }
  func.func @transform_3(%arg0: i32, %arg1: i32) -> (i32, i32, i32) {
    %c0_i32 = arith.constant 0 : i32
    %c0_i32_0 = arith.constant 0 : i32
    return %arg0, %arg1, %c0_i32 : i32, i32, i32
  }
}

</mosaic_0001>

<llo_original>
// kernel: long_axis_self_attention.1
$region0: #{long_axis_self_attention.1}
  #allocation0 [shape = 'u32[]', space=smem, size = 0x4, offset = 0x4, fixed_abs, tag = 'smem constant byte address 0x4 - core index']
  #allocation1 [shape = 'u32[72,128]{1,0:T(1,128)}', space=vmem, size = 0x9000, scoped, tag = 'internal scratch']
  #allocation2 [shape = 'bf16[16,256]{1,0:T(8,128)(2,1)}', space=vmem, size = 0x2000, scoped, tag = 'scratch operand']
  #allocation3 [shape = 'bf16[16,256]{1,0:T(8,128)(2,1)}', space=vmem, size = 0x2000, scoped, tag = 'scratch operand']
  %s0 = inlined_call_operand.hbm [shape: f32[2,16,256], index: 0, kind: input, shape index: {}]
  %s1 = inlined_call_operand.hbm [shape: bf16[256,768], index: 1, kind: input, shape index: {}]
  %s2 = inlined_call_operand.hbm [shape: f32[1,768], index: 2, kind: input, shape index: {}]
  %s3 = inlined_call_operand.hbm [shape: f32[2,16,256], index: 3, kind: output, shape index: {}]
  %s4 = sld [smem:[#allocation0]]
  $region61: #{long_axis_self_attention.1} parent=0
    _
  %s6 = ssub.s32 1, %s4
  %s7 = scalar_select 0, %s6, %s4
  $region1: #{long_axis_self_attention.1} parent=0
    #allocation4 [shape = 'u8[32768]{0}', space=vmem, size = 0x8000, scoped, tag = 'input window, operand 0']
    #allocation5 [shape = 's32[2]{0}', space=sflag, size = 0x8, scoped, tag = 'scoped memory for long_axis_self_attention.1']
    #allocation6 [shape = 's32[2]{0}', space=sflag, size = 0x8, scoped, tag = 'scoped memory for long_axis_self_attention.1']
    #allocation7 [shape = 'u8[393216]{0}', space=vmem, size = 0x60000, scoped, tag = 'input window, operand 1, single buffered']
    #allocation8 [shape = 's32[1]{0}', space=sflag, size = 0x4, scoped, tag = 'scoped memory for long_axis_self_attention.1']
    #allocation9 [shape = 'u8[3072]{0}', space=vmem, size = 0xc00, scoped, tag = 'input window, operand 2, single buffered']
    #allocation10 [shape = 'u8[16384]{0}', space=vmem, size = 0x4000, scoped, tag = 'output window, operand 0']
    %8 = vsyncpa [#allocation5], 0
    %s9 = scalar_lea.sflag [#allocation5], 1
    %10 = vsyncpa %s9, 0
    %11 = vsyncpa [#allocation8], 0
    %12 = vsyncpa [#allocation6], 0
    %s13 = scalar_lea.sflag [#allocation6], 1
    %14 = vsyncpa %s13, 0
    loop: start=0, step=1, limit=6
    $region2: #{long_axis_self_attention.1} parent=1 // loop_pre_header
      _
    $region3: #{long_axis_self_attention.1} parent=1 // loop_header
      %s16 = sphi 0, %s20
      %p17 = scmp.ge.s32.totalorder %s16, 6
      %s23 = sphi 0, %s35
      %s24 = sphi 0, %s31
      %s25 = sphi 0, %s23
      %s26 = sphi 0, %s24
      %s27 = sphi 0, %s25
      %s28 = sphi 0, %s26
      %s38 = sphi 0, %s40
      %s41 = sphi 0, %s38
      %s42 = sphi 0, %s41
      %s58 = sphi 0, %s42
      %s62 = sphi 0, %s62
      %s64 = sphi 0, %s62
      %s65 = sphi 0, %s64
      %s79 = sphi 0, %s65
      %s83 = sphi 0, %s83
      %s85 = sphi 0, %s83
      %s86 = sphi 0, %s85
      %s100 = sphi 0, %s86
      %s108 = sphi 0, %s110
      %s111 = sphi 0, %s108
      %s112 = sphi 0, %s111
      %s128 = sphi 0, %s112
    $region4: #{long_axis_self_attention.1} parent=1 // loop_header_branch
      %19 = sbr.rel (%p17) target = $region8
    $region5: #{long_axis_self_attention.1} parent=1 // loop_body
      %s21 = ssub.s32 %s16, 1
      %s22 = ssub.s32 %s16, 2
      %s29 = sadd.s32 1, %s24
      %p30 = scmp.ge.s32.totalorder %s29, 2
      %s31 = scalar_select %p30, 0, %s29
      %s32 = sadd.s32 1, %s23
      %s33 = scalar_select %p30, %s32, %s23
      %p34 = scmp.ge.s32.totalorder %s33, 2
      %s35 = scalar_select %p34, 0, %s33
      %s36 = ssub.s32 %s23, %s35
      %p37 = scmp.eq.s32.totalorder %s36, 0
      %s39 = sadd.s32 %s38, 1
      %s40 = scalar_select %p37, %s38, %s39
      %p43 = pneg %p37
      %p44 = scmp.eq.s32.totalorder %s16, 3
      %p45 = por %p43, %p44
      %p46 = scmp.ne.s32.totalorder %s38, %s41
      %p47 = scmp.eq.s32.totalorder %s16, 0
      %p48 = por %p46, %p47
      %p49 = scmp.ne.s32.totalorder %s38, %s41
      %p50 = scmp.eq.s32.totalorder %s21, 3
      %p51 = por %p49, %p50
      %p52 = scmp.ne.s32.totalorder %s41, %s42
      %p53 = scmp.eq.s32.totalorder %s21, 0
      %p54 = por %p52, %p53
      %p55 = scmp.ne.s32.totalorder %s41, %s42
      %p56 = scmp.eq.s32.totalorder %s22, 3
      %p57 = por %p55, %p56
      %p59 = scmp.ne.s32.totalorder %s42, %s58
      %p60 = scmp.eq.s32.totalorder %s22, 0
      %p61 = por %p59, %p60
      %s63 = sadd.s32 %s62, 1
      %p66 = scmp.eq.s32.totalorder %s16, 3
      %p67 = scmp.ne.s32.totalorder %s62, %s64
      %p68 = scmp.eq.s32.totalorder %s16, 0
      %p69 = por %p67, %p68
      %p70 = scmp.ne.s32.totalorder %s62, %s64
      %p71 = scmp.eq.s32.totalorder %s21, 3
      %p72 = por %p70, %p71
      %p73 = scmp.ne.s32.totalorder %s64, %s65
      %p74 = scmp.eq.s32.totalorder %s21, 0
      %p75 = por %p73, %p74
      %p76 = scmp.ne.s32.totalorder %s64, %s65
      %p77 = scmp.eq.s32.totalorder %s22, 3
      %p78 = por %p76, %p77
      %p80 = scmp.ne.s32.totalorder %s65, %s79
      %p81 = scmp.eq.s32.totalorder %s22, 0
      %p82 = por %p80, %p81
      %s84 = sadd.s32 %s83, 1
      %p87 = scmp.eq.s32.totalorder %s16, 3
      %p88 = scmp.ne.s32.totalorder %s83, %s85
      %p89 = scmp.eq.s32.totalorder %s16, 0
      %p90 = por %p88, %p89
      %p91 = scmp.ne.s32.totalorder %s83, %s85
      %p92 = scmp.eq.s32.totalorder %s21, 3
      %p93 = por %p91, %p92
      %p94 = scmp.ne.s32.totalorder %s85, %s86
      %p95 = scmp.eq.s32.totalorder %s21, 0
      %p96 = por %p94, %p95
      %p97 = scmp.ne.s32.totalorder %s85, %s86
      %p98 = scmp.eq.s32.totalorder %s22, 3
      %p99 = por %p97, %p98
      %p101 = scmp.ne.s32.totalorder %s86, %s100
      %p102 = scmp.eq.s32.totalorder %s22, 0
      %p103 = por %p101, %p102
      %s104 = ssub.s32 %s23, %s35
      %s105 = ssub.s32 %s24, %s31
      %s106 = sor.u32 %s104, %s105
      %p107 = scmp.eq.s32.totalorder %s106, 0
      %s109 = sadd.s32 %s108, 1
      %s110 = scalar_select %p107, %s108, %s109
      %p113 = pneg %p107
      %p114 = scmp.eq.s32.totalorder %s16, 3
      %p115 = por %p113, %p114
      %p116 = scmp.ne.s32.totalorder %s108, %s111
      %p117 = scmp.eq.s32.totalorder %s16, 0
      %p118 = por %p116, %p117
      %p119 = scmp.ne.s32.totalorder %s108, %s111
      %p120 = scmp.eq.s32.totalorder %s21, 3
      %p121 = por %p119, %p120
      %p122 = scmp.ne.s32.totalorder %s111, %s112
      %p123 = scmp.eq.s32.totalorder %s21, 0
      %p124 = por %p122, %p123
      %p125 = scmp.ne.s32.totalorder %s111, %s112
      %p126 = scmp.eq.s32.totalorder %s22, 3
      %p127 = por %p125, %p126
      %p129 = scmp.ne.s32.totalorder %s112, %s128
      %p130 = scmp.eq.s32.totalorder %s22, 0
      %p131 = por %p129, %p130
      %p132 = scmp.le.s32.totalorder 1, %s16
      %p133 = scmp.lt.s32.totalorder %s16, 5
      %p134 = pnand %p132, %p133
      %p135 = pneg %p134
      // Predicated region
      $region9: #{long_axis_self_attention.1} parent=5 // pred_check
        _
      $region10: #{long_axis_self_attention.1} parent=5 // pred_check_branch
        %137 = sbr.rel (%p134) target = $region12
      $region11: #{long_axis_self_attention.1} parent=5 // pred_region
        %s138 = ssub.s32 %s16, 1
        // Predicated region
        $region13: #{long_axis_self_attention.1} parent=11 // pred_check
          %p139 = pneg %p75
        $region14: #{long_axis_self_attention.1} parent=11 // pred_check_branch
          %141 = sbr.rel (%p139) target = $region16
        $region15: #{long_axis_self_attention.1} parent=11 // pred_region
          %143 = vsyncadd [#allocation8], 0
          %s144 = sshll.u32 %s1, 4
          %s145 = int_to_ptr.hbm [resolvable:$true] %s144
          %s146 = sshll.u32 [#allocation7], 4
          %s147 = int_to_ptr.vmem [resolvable:$true] %s146
          %152 = dma.hbm_to_vmem [thread:$0]  %s145, 12288, %s147, [#allocation8], 384, 384, 24
        $region16: #{long_axis_self_attention.1} parent=11 // pred_fallthru
          _
        // Predicated region
        $region17: #{long_axis_self_attention.1} parent=11 // pred_check
          %p153 = pneg %p96
        $region18: #{long_axis_self_attention.1} parent=11 // pred_check_branch
          %155 = sbr.rel (%p153) target = $region20
        $region19: #{long_axis_self_attention.1} parent=11 // pred_region
          %157 = vsyncadd [#allocation8], 0
          %s159 = sshll.u32 %s2, 4
          %s160 = int_to_ptr.hbm [resolvable:$true] %s159
          %s161 = sshll.u32 [#allocation9], 4
          %s162 = int_to_ptr.vmem [resolvable:$true] %s161
          %164 = dma.hbm_to_vmem [thread:$0]  %s160, 96, %s162, [#allocation8]
        $region20: #{long_axis_self_attention.1} parent=11 // pred_fallthru
          _
      $region12: #{long_axis_self_attention.1} parent=5 // pred_fallthru
        _
      %p165 = scmp.lt.s32.totalorder %s16, 4
      // Predicated region
      $region21: #{long_axis_self_attention.1} parent=5 // pred_check
        %p166 = pneg %p165
      $region22: #{long_axis_self_attention.1} parent=5 // pred_check_branch
        %168 = sbr.rel (%p166) target = $region24
      $region23: #{long_axis_self_attention.1} parent=5 // pred_region
        // Predicated region
        $region25: #{long_axis_self_attention.1} parent=23 // pred_check
          %p169 = pneg %p48
        $region26: #{long_axis_self_attention.1} parent=23 // pred_check_branch
          %171 = sbr.rel (%p169) target = $region28
        $region27: #{long_axis_self_attention.1} parent=23 // pred_region
          %s172 = sand.u32 %s38, 1
          %s173 = scalar_lea.sflag [#allocation5], %s172
          %s174 = sand.u32 %s38, 1
          %s175 = smul.addr %s174, 32
          %s176 = scalar_lea.vmem [#allocation4], %s175
          %178 = vsyncadd %s173, 0
          %s179 = smul.addr %s23, 4
          %s180 = smul.addr %s179, 8
          %s181 = scalar_lea.hbm %s0, %s180
          %s182 = sshll.u32 %s181, 4
          %s183 = int_to_ptr.hbm [resolvable:$true] %s182
          %s184 = sshll.u32 %s176, 4
          %s185 = int_to_ptr.vmem [resolvable:$true] %s184
          %190 = dma.hbm_to_vmem [thread:$0]  %s183, 512, %s185, %s173, 256, 256, 16
        $region28: #{long_axis_self_attention.1} parent=23 // pred_fallthru
          _
      $region24: #{long_axis_self_attention.1} parent=5 // pred_fallthru
        _
      %p191 = scmp.le.s32.totalorder 1, %s16
      %p192 = scmp.lt.s32.totalorder %s16, 5
      %p193 = pnand %p191, %p192
      %p194 = pneg %p193
      // Predicated region
      $region29: #{long_axis_self_attention.1} parent=5 // pred_check
        _
      $region30: #{long_axis_self_attention.1} parent=5 // pred_check_branch
        %196 = sbr.rel (%p193) target = $region32
      $region31: #{long_axis_self_attention.1} parent=5 // pred_region
        %s197 = ssub.s32 %s16, 1
        %s198 = sand.u32 %s41, 1
        %s199 = scalar_lea.sflag [#allocation5], %s198
        %s200 = sand.u32 %s41, 1
        %s201 = smul.addr %s200, 32
        %s202 = scalar_lea.vmem [#allocation4], %s201
        // Predicated region
        $region33: #{long_axis_self_attention.1} parent=31 // pred_check
          %p203 = pneg %p54
        $region34: #{long_axis_self_attention.1} parent=31 // pred_check_branch
          %205 = sbr.rel (%p203) target = $region36
        $region35: #{long_axis_self_attention.1} parent=31 // pred_region
          %207 = dma.done %s199, 512
        $region36: #{long_axis_self_attention.1} parent=31 // pred_fallthru
          _
        // Predicated region
        $region37: #{long_axis_self_attention.1} parent=31 // pred_check
          %p208 = pneg %p75
        $region38: #{long_axis_self_attention.1} parent=31 // pred_check_branch
          %210 = sbr.rel (%p208) target = $region40
        $region39: #{long_axis_self_attention.1} parent=31 // pred_region
          %212 = dma.done [#allocation8], 12288
        $region40: #{long_axis_self_attention.1} parent=31 // pred_fallthru
          _
        // Predicated region
        $region41: #{long_axis_self_attention.1} parent=31 // pred_check
          %p213 = pneg %p96
        $region42: #{long_axis_self_attention.1} parent=31 // pred_check_branch
          %215 = sbr.rel (%p213) target = $region44
        $region43: #{long_axis_self_attention.1} parent=31 // pred_region
          %217 = dma.done [#allocation8], 96
        $region44: #{long_axis_self_attention.1} parent=31 // pred_fallthru
          _
        %s218 = sand.u32 %s41, 1
        %s219 = scalar_lea.sflag [#allocation5], %s218
        %s220 = sand.u32 %s41, 1
        %s221 = smul.addr %s220, 32
        %s222 = scalar_lea.vmem [#allocation4], %s221
        %p223 = pneg %p54
        %p224 = pneg %p51
        %p225 = pneg %p75
        %p226 = pneg %p72
        %p227 = pneg %p96
        %p228 = pneg %p93
        %p229 = pneg %p124
        %p230 = pneg %p121
        %s231 = sand.u32 %s111, 1
        %s232 = scalar_lea.sflag [#allocation6], %s231
        %s233 = sand.u32 %s111, 1
        %s234 = smul.addr %s233, 16
        %s235 = scalar_lea.vmem [#allocation10], %s234
        %p237 = scmp.eq.s32.totalorder %s26, 0
        // Predicated region
        $region45: #{long_axis_self_attention.1} parent=31 // pred_check
          %p238 = pneg %p237
        $region46: #{long_axis_self_attention.1} parent=31 // pred_check_branch
          %240 = sbr.rel (%p238) target = $region48
        $region47: #{long_axis_self_attention.1} parent=31 // pred_region
          %v241 = vld [vmem:[%s202] sm:$0xff]
          %v242 = vld [vmem:[%s202 + $0x8] sm:$0xff]
          %v243 = vld [vmem:[%s202 + $0x10] sm:$0xff]
          %v244 = vld [vmem:[%s202 + $0x18] sm:$0xff]
          %v245 = vpack.c.bf16 %v243, %v241
          %v246 = vpack.c.bf16 %v244, %v242
          %v247 = vld [vmem:[#allocation7 + $0x8] sm:$0xff]
          %v248 = vld [vmem:[#allocation7 + $0x10] sm:$0xff]
          %v249 = vld [vmem:[#allocation7 + $0x20] sm:$0xff]
          %v250 = vld [vmem:[#allocation7 + $0x28] sm:$0xff]
          %v251 = vld [vmem:[#allocation7 + $0x38] sm:$0xff]
          %v252 = vld [vmem:[#allocation7 + $0x40] sm:$0xff]
          %v253 = vld [vmem:[#allocation7 + $0x50] sm:$0xff]
          %v254 = vld [vmem:[#allocation7 + $0x58] sm:$0xff]
          %v255 = vld [vmem:[#allocation7 + $0x68] sm:$0xff]
          %v256 = vld [vmem:[#allocation7 + $0x70] sm:$0xff]
          %v257 = vld [vmem:[#allocation7 + $0x80] sm:$0xff]
          %v258 = vld [vmem:[#allocation7 + $0x88] sm:$0xff]
          %v259 = vld [vmem:[#allocation7 + $0x98] sm:$0xff]
          %v260 = vld [vmem:[#allocation7 + $0xa0] sm:$0xff]
          %v261 = vld [vmem:[#allocation7 + $0xb0] sm:$0xff]
          %v262 = vld [vmem:[#allocation7 + $0xb8] sm:$0xff]
          %v263 = vld [vmem:[#allocation7 + $0xc8] sm:$0xff]
          %v264 = vld [vmem:[#allocation7 + $0xd0] sm:$0xff]
          %v265 = vld [vmem:[#allocation7 + $0xe0] sm:$0xff]
          %v266 = vld [vmem:[#allocation7 + $0xe8] sm:$0xff]
          %v267 = vld [vmem:[#allocation7 + $0xf8] sm:$0xff]
          %v268 = vld [vmem:[#allocation7 + $0x100] sm:$0xff]
          %v269 = vld [vmem:[#allocation7 + $0x110] sm:$0xff]
          %v270 = vld [vmem:[#allocation7 + $0x118] sm:$0xff]
          %v271 = vld [vmem:[#allocation7 + $0x128] sm:$0xff]
          %v272 = vld [vmem:[#allocation7 + $0x130] sm:$0xff]
          %v273 = vld [vmem:[#allocation7 + $0x140] sm:$0xff]
          %v274 = vld [vmem:[#allocation7 + $0x148] sm:$0xff]
          %v275 = vld [vmem:[#allocation7 + $0x158] sm:$0xff]
          %v276 = vld [vmem:[#allocation7 + $0x160] sm:$0xff]
          %v277 = vld [vmem:[#allocation7 + $0x170] sm:$0xff]
          %v278 = vld [vmem:[#allocation7 + $0x178] sm:$0xff]
          %v279 = vld [vmem:[#allocation7 + $0x188] sm:$0xff]
          %v280 = vld [vmem:[#allocation7 + $0x190] sm:$0xff]
          %v281 = vld [vmem:[#allocation7 + $0x1a0] sm:$0xff]
          %v282 = vld [vmem:[#allocation7 + $0x1a8] sm:$0xff]
          %v283 = vld [vmem:[#allocation7 + $0x1b8] sm:$0xff]
          %v284 = vld [vmem:[#allocation7 + $0x1c0] sm:$0xff]
          %v285 = vld [vmem:[#allocation7 + $0x1d0] sm:$0xff]
          %v286 = vld [vmem:[#allocation7 + $0x1d8] sm:$0xff]
          %v287 = vld [vmem:[#allocation7 + $0x1e8] sm:$0xff]
          %v288 = vld [vmem:[#allocation7 + $0x1f0] sm:$0xff]
          %v289 = vld [vmem:[#allocation7 + $0x200] sm:$0xff]
          %v290 = vld [vmem:[#allocation7 + $0x208] sm:$0xff]
          %v291 = vld [vmem:[#allocation7 + $0x218] sm:$0xff]
          %v292 = vld [vmem:[#allocation7 + $0x220] sm:$0xff]
          %v293 = vld [vmem:[#allocation7 + $0x230] sm:$0xff]
          %v294 = vld [vmem:[#allocation7 + $0x238] sm:$0xff]
          %v295 = vld [vmem:[#allocation7 + $0x248] sm:$0xff]
          %v296 = vld [vmem:[#allocation7 + $0x250] sm:$0xff]
          %v297 = vld [vmem:[#allocation7 + $0x260] sm:$0xff]
          %v298 = vld [vmem:[#allocation7 + $0x268] sm:$0xff]
          %v299 = vld [vmem:[#allocation7 + $0x278] sm:$0xff]
          %v300 = vld [vmem:[#allocation7 + $0x280] sm:$0xff]
          %v301 = vld [vmem:[#allocation7 + $0x290] sm:$0xff]
          %v302 = vld [vmem:[#allocation7 + $0x298] sm:$0xff]
          %v303 = vld [vmem:[#allocation7 + $0x2a8] sm:$0xff]
          %v304 = vld [vmem:[#allocation7 + $0x2b0] sm:$0xff]
          %v305 = vld [vmem:[#allocation7 + $0x2c0] sm:$0xff]
          %v306 = vld [vmem:[#allocation7 + $0x2c8] sm:$0xff]
          %v307 = vld [vmem:[#allocation7 + $0x2d8] sm:$0xff]
          %v308 = vld [vmem:[#allocation7 + $0x2e0] sm:$0xff]
          %v309 = vld [vmem:[#allocation7 + $0x2f0] sm:$0xff]
          %v310 = vld [vmem:[#allocation7 + $0x2f8] sm:$0xff]
          %v311 = vld [vmem:[#allocation9 + $0x2] sm:$0xf]
          %v313 = vperm.slane %v311, 0
          %v314 = vperm.slane %v311, 1
          %v315 = vperm.slane %v311, 2
          %v316 = vperm.slane %v311, 3
          %v385 = vunpack.c.l.b16 %v247
          %v386 = vunpack.c.h.b16 %v247
          %v387 = vunpack.c.l.b16 %v248
          %v388 = vunpack.c.h.b16 %v248
          %v389 = vunpack.c.l.b16 %v249
          %v390 = vunpack.c.h.b16 %v249
          %v391 = vunpack.c.l.b16 %v250
          %v392 = vunpack.c.h.b16 %v250
          %v393 = vunpack.c.l.b16 %v251
          %v394 = vunpack.c.h.b16 %v251
          %v395 = vunpack.c.l.b16 %v252
          %v396 = vunpack.c.h.b16 %v252
          %v397 = vunpack.c.l.b16 %v253
          %v398 = vunpack.c.h.b16 %v253
          %v399 = vunpack.c.l.b16 %v254
          %v400 = vunpack.c.h.b16 %v254
          %v401 = vunpack.c.l.b16 %v255
          %v402 = vunpack.c.h.b16 %v255
          %v403 = vunpack.c.l.b16 %v256
          %v404 = vunpack.c.h.b16 %v256
          %v405 = vunpack.c.l.b16 %v257
          %v406 = vunpack.c.h.b16 %v257
          %v407 = vunpack.c.l.b16 %v258
          %v408 = vunpack.c.h.b16 %v258
          %v409 = vunpack.c.l.b16 %v259
          %v410 = vunpack.c.h.b16 %v259
          %v411 = vunpack.c.l.b16 %v260
          %v412 = vunpack.c.h.b16 %v260
          %v413 = vunpack.c.l.b16 %v261
          %v414 = vunpack.c.h.b16 %v261
          %v415 = vunpack.c.l.b16 %v262
          %v416 = vunpack.c.h.b16 %v262
          %v417 = vunpack.c.l.b16 %v263
          %v418 = vunpack.c.h.b16 %v263
          %v419 = vunpack.c.l.b16 %v264
          %v420 = vunpack.c.h.b16 %v264
          %v421 = vunpack.c.l.b16 %v265
          %v422 = vunpack.c.h.b16 %v265
          %v423 = vunpack.c.l.b16 %v266
          %v424 = vunpack.c.h.b16 %v266
          %v425 = vunpack.c.l.b16 %v267
          %v426 = vunpack.c.h.b16 %v267
          %v427 = vunpack.c.l.b16 %v268
          %v428 = vunpack.c.h.b16 %v268
          %v429 = vunpack.c.l.b16 %v269
          %v430 = vunpack.c.h.b16 %v269
          %v431 = vunpack.c.l.b16 %v270
          %v432 = vunpack.c.h.b16 %v270
          %v433 = vunpack.c.l.b16 %v271
          %v434 = vunpack.c.h.b16 %v271
          %v435 = vunpack.c.l.b16 %v272
          %v436 = vunpack.c.h.b16 %v272
          %v437 = vunpack.c.l.b16 %v273
          %v438 = vunpack.c.h.b16 %v273
          %v439 = vunpack.c.l.b16 %v274
          %v440 = vunpack.c.h.b16 %v274
          %v441 = vunpack.c.l.b16 %v275
          %v442 = vunpack.c.h.b16 %v275
          %v443 = vunpack.c.l.b16 %v276
          %v444 = vunpack.c.h.b16 %v276
          %v445 = vunpack.c.l.b16 %v277
          %v446 = vunpack.c.h.b16 %v277
          %v447 = vunpack.c.l.b16 %v278
          %v448 = vunpack.c.h.b16 %v278
          %v449 = vunpack.c.l.b16 %v279
          %v450 = vunpack.c.h.b16 %v279
          %v451 = vunpack.c.l.b16 %v280
          %v452 = vunpack.c.h.b16 %v280
          %v453 = vunpack.c.l.b16 %v281
          %v454 = vunpack.c.h.b16 %v281
          %v455 = vunpack.c.l.b16 %v282
          %v456 = vunpack.c.h.b16 %v282
          %v457 = vunpack.c.l.b16 %v283
          %v458 = vunpack.c.h.b16 %v283
          %v459 = vunpack.c.l.b16 %v284
          %v460 = vunpack.c.h.b16 %v284
          %v461 = vunpack.c.l.b16 %v285
          %v462 = vunpack.c.h.b16 %v285
          %v463 = vunpack.c.l.b16 %v286
          %v464 = vunpack.c.h.b16 %v286
          %v465 = vunpack.c.l.b16 %v287
          %v466 = vunpack.c.h.b16 %v287
          %v467 = vunpack.c.l.b16 %v288
          %v468 = vunpack.c.h.b16 %v288
          %v469 = vunpack.c.l.b16 %v289
          %v470 = vunpack.c.h.b16 %v289
          %v471 = vunpack.c.l.b16 %v290
          %v472 = vunpack.c.h.b16 %v290
          %v473 = vunpack.c.l.b16 %v291
          %v474 = vunpack.c.h.b16 %v291
          %v475 = vunpack.c.l.b16 %v292
          %v476 = vunpack.c.h.b16 %v292
          %v477 = vunpack.c.l.b16 %v293
          %v478 = vunpack.c.h.b16 %v293
          %v479 = vunpack.c.l.b16 %v294
          %v480 = vunpack.c.h.b16 %v294
          %v481 = vunpack.c.l.b16 %v295
          %v482 = vunpack.c.h.b16 %v295
          %v483 = vunpack.c.l.b16 %v296
          %v484 = vunpack.c.h.b16 %v296
          %v485 = vunpack.c.l.b16 %v297
          %v486 = vunpack.c.h.b16 %v297
          %v487 = vunpack.c.l.b16 %v298
          %v488 = vunpack.c.h.b16 %v298
          %v489 = vunpack.c.l.b16 %v299
          %v490 = vunpack.c.h.b16 %v299
          %v491 = vunpack.c.l.b16 %v300
          %v492 = vunpack.c.h.b16 %v300
          %v493 = vunpack.c.l.b16 %v301
          %v494 = vunpack.c.h.b16 %v301
          %v495 = vunpack.c.l.b16 %v302
          %v496 = vunpack.c.h.b16 %v302
          %v497 = vunpack.c.l.b16 %v303
          %v498 = vunpack.c.h.b16 %v303
          %v499 = vunpack.c.l.b16 %v304
          %v500 = vunpack.c.h.b16 %v304
          %v501 = vunpack.c.l.b16 %v305
          %v502 = vunpack.c.h.b16 %v305
          %v503 = vunpack.c.l.b16 %v306
          %v504 = vunpack.c.h.b16 %v306
          %v505 = vunpack.c.l.b16 %v307
          %v506 = vunpack.c.h.b16 %v307
          %v507 = vunpack.c.l.b16 %v308
          %v508 = vunpack.c.h.b16 %v308
          %v509 = vunpack.c.l.b16 %v309
          %v510 = vunpack.c.h.b16 %v309
          %v511 = vunpack.c.l.b16 %v310
          %v512 = vunpack.c.h.b16 %v310
          %v513 = vpack.c.b16 %v389, %v385
          %v514 = vpack.c.b16 %v390, %v386
          %v515 = vpack.c.b16 %v391, %v387
          %v516 = vpack.c.b16 %v392, %v388
          %v517 = vpack.c.b16 %v397, %v393
          %v518 = vpack.c.b16 %v398, %v394
          %v519 = vpack.c.b16 %v399, %v395
          %v520 = vpack.c.b16 %v400, %v396
          %v521 = vpack.c.b16 %v405, %v401
          %v522 = vpack.c.b16 %v406, %v402
          %v523 = vpack.c.b16 %v407, %v403
          %v524 = vpack.c.b16 %v408, %v404
          %v525 = vpack.c.b16 %v413, %v409
          %v526 = vpack.c.b16 %v414, %v410
          %v527 = vpack.c.b16 %v415, %v411
          %v528 = vpack.c.b16 %v416, %v412
          %v529 = vpack.c.b16 %v421, %v417
          %v530 = vpack.c.b16 %v422, %v418
          %v531 = vpack.c.b16 %v423, %v419
          %v532 = vpack.c.b16 %v424, %v420
          %v533 = vpack.c.b16 %v429, %v425
          %v534 = vpack.c.b16 %v430, %v426
          %v535 = vpack.c.b16 %v431, %v427
          %v536 = vpack.c.b16 %v432, %v428
          %v537 = vpack.c.b16 %v437, %v433
          %v538 = vpack.c.b16 %v438, %v434
          %v539 = vpack.c.b16 %v439, %v435
          %v540 = vpack.c.b16 %v440, %v436
          %v541 = vpack.c.b16 %v445, %v441
          %v542 = vpack.c.b16 %v446, %v442
          %v543 = vpack.c.b16 %v447, %v443
          %v544 = vpack.c.b16 %v448, %v444
          %v545 = vpack.c.b16 %v453, %v449
          %v546 = vpack.c.b16 %v454, %v450
          %v547 = vpack.c.b16 %v455, %v451
          %v548 = vpack.c.b16 %v456, %v452
          %v549 = vpack.c.b16 %v461, %v457
          %v550 = vpack.c.b16 %v462, %v458
          %v551 = vpack.c.b16 %v463, %v459
          %v552 = vpack.c.b16 %v464, %v460
          %v553 = vpack.c.b16 %v469, %v465
          %v554 = vpack.c.b16 %v470, %v466
          %v555 = vpack.c.b16 %v471, %v467
          %v556 = vpack.c.b16 %v472, %v468
          %v557 = vpack.c.b16 %v477, %v473
          %v558 = vpack.c.b16 %v478, %v474
          %v559 = vpack.c.b16 %v479, %v475
          %v560 = vpack.c.b16 %v480, %v476
          %v561 = vpack.c.b16 %v485, %v481
          %v562 = vpack.c.b16 %v486, %v482
          %v563 = vpack.c.b16 %v487, %v483
          %v564 = vpack.c.b16 %v488, %v484
          %v565 = vpack.c.b16 %v493, %v489
          %v566 = vpack.c.b16 %v494, %v490
          %v567 = vpack.c.b16 %v495, %v491
          %v568 = vpack.c.b16 %v496, %v492
          %v569 = vpack.c.b16 %v501, %v497
          %v570 = vpack.c.b16 %v502, %v498
          %v571 = vpack.c.b16 %v503, %v499
          %v572 = vpack.c.b16 %v504, %v500
          %v573 = vpack.c.b16 %v509, %v505
          %v574 = vpack.c.b16 %v510, %v506
          %v575 = vpack.c.b16 %v511, %v507
          %v576 = vpack.c.b16 %v512, %v508
          %641 = vmatpush.bf16.msra.mxu0 %v541
          %642 = vmatpush.bf16.msra.mxu0 %v537
          %643 = vmatpush.bf16.msra.mxu0 %v533
          %644 = vmatpush.bf16.msra.mxu0 %v529
          %645 = vmatpush.bf16.msra.mxu0 %v525
          %646 = vmatpush.bf16.msra.mxu0 %v521
          %647 = vmatpush.bf16.msra.mxu0 %v517
          %648 = vmatpush.bf16.msra.mxu0 %v513
          %649 = vmatmul.bf16.gmra.mxu0 %v245
          %v650 = vpop.f32.mrf.mxu0
          %v651 = vadd.f32 %v313, %v650
          %v652 = vpop.f32.mrf.mxu0
          %v653 = vadd.f32 %v313, %v652
          %654 = vdwg.mxu0
          %655 = vmatpush.bf16.msra.mxu0 %v573
          %656 = vmatpush.bf16.msra.mxu0 %v569
          %657 = vmatpush.bf16.msra.mxu0 %v565
          %658 = vmatpush.bf16.msra.mxu0 %v561
          %659 = vmatpush.bf16.msra.mxu0 %v557
          %660 = vmatpush.bf16.msra.mxu0 %v553
          %661 = vmatpush.bf16.msra.mxu0 %v549
          %662 = vmatpush.bf16.msra.mxu0 %v545
          %663 = vmatmul.bf16.gmra.mxu0 %v246
          %v664 = vpop.f32.mrf.mxu0
          %v665 = vadd.f32 %v651, %v664
          %v666 = vpop.f32.mrf.mxu0
          %v667 = vadd.f32 %v653, %v666
          %668 = vdwg.mxu0
          %669 = vmatpush.bf16.msra.mxu0 %v542
          %670 = vmatpush.bf16.msra.mxu0 %v538
          %671 = vmatpush.bf16.msra.mxu0 %v534
          %672 = vmatpush.bf16.msra.mxu0 %v530
          %673 = vmatpush.bf16.msra.mxu0 %v526
          %674 = vmatpush.bf16.msra.mxu0 %v522
          %675 = vmatpush.bf16.msra.mxu0 %v518
          %676 = vmatpush.bf16.msra.mxu0 %v514
          %677 = vmatmul.bf16.gmra.mxu0 %v245
          %v678 = vpop.f32.mrf.mxu0
          %v679 = vadd.f32 %v314, %v678
          %v680 = vpop.f32.mrf.mxu0
          %v681 = vadd.f32 %v314, %v680
          %682 = vdwg.mxu0
          %683 = vmatpush.bf16.msra.mxu0 %v574
          %684 = vmatpush.bf16.msra.mxu0 %v570
          %685 = vmatpush.bf16.msra.mxu0 %v566
          %686 = vmatpush.bf16.msra.mxu0 %v562
          %687 = vmatpush.bf16.msra.mxu0 %v558
          %688 = vmatpush.bf16.msra.mxu0 %v554
          %689 = vmatpush.bf16.msra.mxu0 %v550
          %690 = vmatpush.bf16.msra.mxu0 %v546
          %691 = vmatmul.bf16.gmra.mxu0 %v246
          %v692 = vpop.f32.mrf.mxu0
          %v693 = vadd.f32 %v679, %v692
          %v694 = vpop.f32.mrf.mxu0
          %v695 = vadd.f32 %v681, %v694
          %696 = vdwg.mxu0
          %697 = vmatpush.bf16.msra.mxu0 %v543
          %698 = vmatpush.bf16.msra.mxu0 %v539
          %699 = vmatpush.bf16.msra.mxu0 %v535
          %700 = vmatpush.bf16.msra.mxu0 %v531
          %701 = vmatpush.bf16.msra.mxu0 %v527
          %702 = vmatpush.bf16.msra.mxu0 %v523
          %703 = vmatpush.bf16.msra.mxu0 %v519
          %704 = vmatpush.bf16.msra.mxu0 %v515
          %705 = vmatmul.bf16.gmra.mxu0 %v245
          %v706 = vpop.f32.mrf.mxu0
          %v707 = vadd.f32 %v315, %v706
          %v708 = vpop.f32.mrf.mxu0
          %v709 = vadd.f32 %v315, %v708
          %710 = vdwg.mxu0
          %711 = vmatpush.bf16.msra.mxu0 %v575
          %712 = vmatpush.bf16.msra.mxu0 %v571
          %713 = vmatpush.bf16.msra.mxu0 %v567
          %714 = vmatpush.bf16.msra.mxu0 %v563
          %715 = vmatpush.bf16.msra.mxu0 %v559
          %716 = vmatpush.bf16.msra.mxu0 %v555
          %717 = vmatpush.bf16.msra.mxu0 %v551
          %718 = vmatpush.bf16.msra.mxu0 %v547
          %719 = vmatmul.bf16.gmra.mxu0 %v246
          %v720 = vpop.f32.mrf.mxu0
          %v721 = vadd.f32 %v707, %v720
          %v722 = vpop.f32.mrf.mxu0
          %v723 = vadd.f32 %v709, %v722
          %724 = vdwg.mxu0
          %725 = vmatpush.bf16.msra.mxu0 %v544
          %726 = vmatpush.bf16.msra.mxu0 %v540
          %727 = vmatpush.bf16.msra.mxu0 %v536
          %728 = vmatpush.bf16.msra.mxu0 %v532
          %729 = vmatpush.bf16.msra.mxu0 %v528
          %730 = vmatpush.bf16.msra.mxu0 %v524
          %731 = vmatpush.bf16.msra.mxu0 %v520
          %732 = vmatpush.bf16.msra.mxu0 %v516
          %733 = vmatmul.bf16.gmra.mxu0 %v245
          %v734 = vpop.f32.mrf.mxu0
          %v735 = vadd.f32 %v316, %v734
          %v736 = vpop.f32.mrf.mxu0
          %v737 = vadd.f32 %v316, %v736
          %738 = vdwg.mxu0
          %739 = vmatpush.bf16.msra.mxu0 %v576
          %740 = vmatpush.bf16.msra.mxu0 %v572
          %741 = vmatpush.bf16.msra.mxu0 %v568
          %742 = vmatpush.bf16.msra.mxu0 %v564
          %743 = vmatpush.bf16.msra.mxu0 %v560
          %744 = vmatpush.bf16.msra.mxu0 %v556
          %745 = vmatpush.bf16.msra.mxu0 %v552
          %746 = vmatpush.bf16.msra.mxu0 %v548
          %747 = vmatmul.bf16.gmra.mxu0 %v246
          %v748 = vpop.f32.mrf.mxu0
          %v749 = vadd.f32 %v735, %v748
          %v750 = vpop.f32.mrf.mxu0
          %v751 = vadd.f32 %v737, %v750
          %752 = vdwg.mxu0
          %v753 = vpack.c.bf16 %v693, %v665
          %v754 = vpack.c.bf16 %v695, %v667
          %755 = vst [vmem:[#allocation2] sm:$0xff] %v753
          %756 = vst [vmem:[#allocation2 + $0x8] sm:$0xff] %v754
          %v757 = vpack.c.bf16 %v749, %v721
          %v758 = vpack.c.bf16 %v751, %v723
          %759 = vst [vmem:[#allocation3] sm:$0xff] %v757
          %760 = vst [vmem:[#allocation3 + $0x8] sm:$0xff] %v758
        $region48: #{long_axis_self_attention.1} parent=31 // pred_fallthru
          _
        %s761 = smul.u32 %s26, 8
        %s762 = sshra.s32 %s761, 3
        %s763 = sand.u32 %s761, 7
        %s764 = smul.u32 %s762, 2
        %s765 = smul.addr %s764, 8
        %s766 = scalar_lea.vmem %s202, %s765 [#allocation4]
        %v767 = vld [vmem:[%s766] sm:$0xff]
        %v768 = vld [vmem:[%s766 + $0x8] sm:$0xff]
        %v769 = vpack.c.bf16 %v767, %v767
        %v770 = vpack.c.bf16 %v768, %v768
        %v771 = vld [vmem:[#allocation7] sm:$0xff]
        %v772 = vld [vmem:[#allocation7 + $0x18] sm:$0xff]
        %v773 = vld [vmem:[#allocation7 + $0x30] sm:$0xff]
        %v774 = vld [vmem:[#allocation7 + $0x48] sm:$0xff]
        %v775 = vld [vmem:[#allocation7 + $0x60] sm:$0xff]
        %v776 = vld [vmem:[#allocation7 + $0x78] sm:$0xff]
        %v777 = vld [vmem:[#allocation7 + $0x90] sm:$0xff]
        %v778 = vld [vmem:[#allocation7 + $0xa8] sm:$0xff]
        %v779 = vld [vmem:[#allocation7 + $0xc0] sm:$0xff]
        %v780 = vld [vmem:[#allocation7 + $0xd8] sm:$0xff]
        %v781 = vld [vmem:[#allocation7 + $0xf0] sm:$0xff]
        %v782 = vld [vmem:[#allocation7 + $0x108] sm:$0xff]
        %v783 = vld [vmem:[#allocation7 + $0x120] sm:$0xff]
        %v784 = vld [vmem:[#allocation7 + $0x138] sm:$0xff]
        %v785 = vld [vmem:[#allocation7 + $0x150] sm:$0xff]
        %v786 = vld [vmem:[#allocation7 + $0x168] sm:$0xff]
        %v787 = vld [vmem:[#allocation7 + $0x180] sm:$0xff]
        %v788 = vld [vmem:[#allocation7 + $0x198] sm:$0xff]
        %v789 = vld [vmem:[#allocation7 + $0x1b0] sm:$0xff]
        %v790 = vld [vmem:[#allocation7 + $0x1c8] sm:$0xff]
        %v791 = vld [vmem:[#allocation7 + $0x1e0] sm:$0xff]
        %v792 = vld [vmem:[#allocation7 + $0x1f8] sm:$0xff]
        %v793 = vld [vmem:[#allocation7 + $0x210] sm:$0xff]
        %v794 = vld [vmem:[#allocation7 + $0x228] sm:$0xff]
        %v795 = vld [vmem:[#allocation7 + $0x240] sm:$0xff]
        %v796 = vld [vmem:[#allocation7 + $0x258] sm:$0xff]
        %v797 = vld [vmem:[#allocation7 + $0x270] sm:$0xff]
        %v798 = vld [vmem:[#allocation7 + $0x288] sm:$0xff]
        %v799 = vld [vmem:[#allocation7 + $0x2a0] sm:$0xff]
        %v800 = vld [vmem:[#allocation7 + $0x2b8] sm:$0xff]
        %v801 = vld [vmem:[#allocation7 + $0x2d0] sm:$0xff]
        %v802 = vld [vmem:[#allocation7 + $0x2e8] sm:$0xff]
        %v803 = vld [vmem:[#allocation9] sm:$0x3]
        %v805 = vperm.slane %v803, 0
        %v806 = vperm.slane %v803, 1
        %v841 = vunpack.c.l.b16 %v771
        %v842 = vunpack.c.h.b16 %v771
        %v843 = vunpack.c.l.b16 %v772
        %v844 = vunpack.c.h.b16 %v772
        %v845 = vunpack.c.l.b16 %v773
        %v846 = vunpack.c.h.b16 %v773
        %v847 = vunpack.c.l.b16 %v774
        %v848 = vunpack.c.h.b16 %v774
        %v849 = vunpack.c.l.b16 %v775
        %v850 = vunpack.c.h.b16 %v775
        %v851 = vunpack.c.l.b16 %v776
        %v852 = vunpack.c.h.b16 %v776
        %v853 = vunpack.c.l.b16 %v777
        %v854 = vunpack.c.h.b16 %v777
        %v855 = vunpack.c.l.b16 %v778
        %v856 = vunpack.c.h.b16 %v778
        %v857 = vunpack.c.l.b16 %v779
        %v858 = vunpack.c.h.b16 %v779
        %v859 = vunpack.c.l.b16 %v780
        %v860 = vunpack.c.h.b16 %v780
        %v861 = vunpack.c.l.b16 %v781
        %v862 = vunpack.c.h.b16 %v781
        %v863 = vunpack.c.l.b16 %v782
        %v864 = vunpack.c.h.b16 %v782
        %v865 = vunpack.c.l.b16 %v783
        %v866 = vunpack.c.h.b16 %v783
        %v867 = vunpack.c.l.b16 %v784
        %v868 = vunpack.c.h.b16 %v784
        %v869 = vunpack.c.l.b16 %v785
        %v870 = vunpack.c.h.b16 %v785
        %v871 = vunpack.c.l.b16 %v786
        %v872 = vunpack.c.h.b16 %v786
        %v873 = vunpack.c.l.b16 %v787
        %v874 = vunpack.c.h.b16 %v787
        %v875 = vunpack.c.l.b16 %v788
        %v876 = vunpack.c.h.b16 %v788
        %v877 = vunpack.c.l.b16 %v789
        %v878 = vunpack.c.h.b16 %v789
        %v879 = vunpack.c.l.b16 %v790
        %v880 = vunpack.c.h.b16 %v790
        %v881 = vunpack.c.l.b16 %v791
        %v882 = vunpack.c.h.b16 %v791
        %v883 = vunpack.c.l.b16 %v792
        %v884 = vunpack.c.h.b16 %v792
        %v885 = vunpack.c.l.b16 %v793
        %v886 = vunpack.c.h.b16 %v793
        %v887 = vunpack.c.l.b16 %v794
        %v888 = vunpack.c.h.b16 %v794
        %v889 = vunpack.c.l.b16 %v795
        %v890 = vunpack.c.h.b16 %v795
        %v891 = vunpack.c.l.b16 %v796
        %v892 = vunpack.c.h.b16 %v796
        %v893 = vunpack.c.l.b16 %v797
        %v894 = vunpack.c.h.b16 %v797
        %v895 = vunpack.c.l.b16 %v798
        %v896 = vunpack.c.h.b16 %v798
        %v897 = vunpack.c.l.b16 %v799
        %v898 = vunpack.c.h.b16 %v799
        %v899 = vunpack.c.l.b16 %v800
        %v900 = vunpack.c.h.b16 %v800
        %v901 = vunpack.c.l.b16 %v801
        %v902 = vunpack.c.h.b16 %v801
        %v903 = vunpack.c.l.b16 %v802
        %v904 = vunpack.c.h.b16 %v802
        %v905 = vpack.c.b16 %v843, %v841
        %v906 = vpack.c.b16 %v844, %v842
        %v907 = vpack.c.b16 %v847, %v845
        %v908 = vpack.c.b16 %v848, %v846
        %v909 = vpack.c.b16 %v851, %v849
        %v910 = vpack.c.b16 %v852, %v850
        %v911 = vpack.c.b16 %v855, %v853
        %v912 = vpack.c.b16 %v856, %v854
        %v913 = vpack.c.b16 %v859, %v857
        %v914 = vpack.c.b16 %v860, %v858
        %v915 = vpack.c.b16 %v863, %v861
        %v916 = vpack.c.b16 %v864, %v862
        %v917 = vpack.c.b16 %v867, %v865
        %v918 = vpack.c.b16 %v868, %v866
        %v919 = vpack.c.b16 %v871, %v869
        %v920 = vpack.c.b16 %v872, %v870
        %v921 = vpack.c.b16 %v875, %v873
        %v922 = vpack.c.b16 %v876, %v874
        %v923 = vpack.c.b16 %v879, %v877
        %v924 = vpack.c.b16 %v880, %v878
        %v925 = vpack.c.b16 %v883, %v881
        %v926 = vpack.c.b16 %v884, %v882
        %v927 = vpack.c.b16 %v887, %v885
        %v928 = vpack.c.b16 %v888, %v886
        %v929 = vpack.c.b16 %v891, %v889
        %v930 = vpack.c.b16 %v892, %v890
        %v931 = vpack.c.b16 %v895, %v893
        %v932 = vpack.c.b16 %v896, %v894
        %v933 = vpack.c.b16 %v899, %v897
        %v934 = vpack.c.b16 %v900, %v898
        %v935 = vpack.c.b16 %v903, %v901
        %v936 = vpack.c.b16 %v904, %v902
        %969 = vmatpush.bf16.msra.mxu0 %v919
        %970 = vmatpush.bf16.msra.mxu0 %v917
        %971 = vmatpush.bf16.msra.mxu0 %v915
        %972 = vmatpush.bf16.msra.mxu0 %v913
        %973 = vmatpush.bf16.msra.mxu0 %v911
        %974 = vmatpush.bf16.msra.mxu0 %v909
        %975 = vmatpush.bf16.msra.mxu0 %v907
        %976 = vmatpush.bf16.msra.mxu0 %v905
        %977 = vmatmul.bf16.gmra.mxu0 %v769
        %v978 = vpop.f32.mrf.mxu0
        %v979 = vadd.f32 %v805, %v978
        %v980 = vpop.f32.mrf.mxu0
        %981 = vdwg.mxu0
        %982 = vmatpush.bf16.msra.mxu0 %v935
        %983 = vmatpush.bf16.msra.mxu0 %v933
        %984 = vmatpush.bf16.msra.mxu0 %v931
        %985 = vmatpush.bf16.msra.mxu0 %v929
        %986 = vmatpush.bf16.msra.mxu0 %v927
        %987 = vmatpush.bf16.msra.mxu0 %v925
        %988 = vmatpush.bf16.msra.mxu0 %v923
        %989 = vmatpush.bf16.msra.mxu0 %v921
        %990 = vmatmul.bf16.gmra.mxu0 %v770
        %v991 = vpop.f32.mrf.mxu0
        %v992 = vadd.f32 %v979, %v991
        %v993 = vpop.f32.mrf.mxu0
        %994 = vdwg.mxu0
        %995 = vmatpush.bf16.msra.mxu0 %v920
        %996 = vmatpush.bf16.msra.mxu0 %v918
        %997 = vmatpush.bf16.msra.mxu0 %v916
        %998 = vmatpush.bf16.msra.mxu0 %v914
        %999 = vmatpush.bf16.msra.mxu0 %v912
        %1000 = vmatpush.bf16.msra.mxu0 %v910
        %1001 = vmatpush.bf16.msra.mxu0 %v908
        %1002 = vmatpush.bf16.msra.mxu0 %v906
        %1003 = vmatmul.bf16.gmra.mxu0 %v769
        %v1004 = vpop.f32.mrf.mxu0
        %v1005 = vadd.f32 %v806, %v1004
        %v1006 = vpop.f32.mrf.mxu0
        %1007 = vdwg.mxu0
        %1008 = vmatpush.bf16.msra.mxu0 %v936
        %1009 = vmatpush.bf16.msra.mxu0 %v934
        %1010 = vmatpush.bf16.msra.mxu0 %v932
        %1011 = vmatpush.bf16.msra.mxu0 %v930
        %1012 = vmatpush.bf16.msra.mxu0 %v928
        %1013 = vmatpush.bf16.msra.mxu0 %v926
        %1014 = vmatpush.bf16.msra.mxu0 %v924
        %1015 = vmatpush.bf16.msra.mxu0 %v922
        %1016 = vmatmul.bf16.gmra.mxu0 %v770
        %v1017 = vpop.f32.mrf.mxu0
        %v1018 = vadd.f32 %v1005, %v1017
        %v1019 = vpop.f32.mrf.mxu0
        %1020 = vdwg.mxu0
        %v1021 = vmul.f32 %v992, 0.17677669
        %v1022 = vmul.f32 %v1018, 0.17677669
        %v1023 = vpack.c.bf16 %v1022, %v1021
        %v1024 = vlaneseq
        %v1025 = vshrl.u32 %v1024, 7
        %v1026 = vstv %s761
        %v1027 = vadd.s32 %v1025, %v1026
        %v1028 = vlaneseq
        %v1029 = vand.u32 %v1028, 127
        %v1030 = vand.u32 %v1027, 3
        %v1031 = vand.u32 %v1029, 3
        %vm1032 = vcmp.eq.s32.totalorder %v1030, %v1031
        %1034 = vrot.lane.b32.xlu0 %v1023, 96
        %v1035 = vpop.permute.xlu0 %1034
        %1036 = vrot.lane.b32.xlu0 %v1023, 64
        %v1037 = vpop.permute.xlu0 %1036
        %1038 = vrot.lane.b32.xlu0 %v1023, 32
        %v1039 = vpop.permute.xlu0 %1038
        %v1040 = vld [vmem:[#allocation2] sm:$0xf]
        %v1041 = vld [vmem:[#allocation2 + $0x8] sm:$0xf]
        %1044 = vrot.lane.b32.xlu0 %v1040, 96
        %v1045 = vpop.permute.xlu0 %1044
        %1046 = vrot.lane.b32.xlu0 %v1041, 96
        %v1047 = vpop.permute.xlu0 %1046
        %1048 = vrot.lane.b32.xlu0 %v1040, 64
        %v1049 = vpop.permute.xlu0 %1048
        %1050 = vrot.lane.b32.xlu0 %v1041, 64
        %v1051 = vpop.permute.xlu0 %1050
        %1052 = vrot.lane.b32.xlu0 %v1040, 32
        %v1053 = vpop.permute.xlu0 %1052
        %1054 = vrot.lane.b32.xlu0 %v1041, 32
        %v1055 = vpop.permute.xlu0 %1054
        %v1056 = vld [vmem:[#allocation3] sm:$0xf]
        %v1057 = vld [vmem:[#allocation3 + $0x8] sm:$0xf]
        %1060 = vrot.lane.b32.xlu0 %v1056, 96
        %v1061 = vpop.permute.xlu0 %1060
        %1062 = vrot.lane.b32.xlu0 %v1057, 96
        %v1063 = vpop.permute.xlu0 %1062
        %1064 = vrot.lane.b32.xlu0 %v1056, 64
        %v1065 = vpop.permute.xlu0 %1064
        %1066 = vrot.lane.b32.xlu0 %v1057, 64
        %v1067 = vpop.permute.xlu0 %1066
        %1068 = vrot.lane.b32.xlu0 %v1056, 32
        %v1069 = vpop.permute.xlu0 %1068
        %1070 = vrot.lane.b32.xlu0 %v1057, 32
        %v1071 = vpop.permute.xlu0 %1070
        %v1072 = vunpack.c.l.b16 %v1040
        %v1073 = vunpack.c.l.b16 %v1041
        %v1074 = vunpack.c.l.b16 %v1045
        %v1075 = vunpack.c.l.b16 %v1047
        %v1076 = vunpack.c.l.b16 %v1049
        %v1077 = vunpack.c.l.b16 %v1051
        %v1078 = vunpack.c.l.b16 %v1053
        %v1079 = vunpack.c.l.b16 %v1055
        %v1080 = vpack.c.b16 %v1073, %v1072
        %v1081 = vpack.c.b16 %v1075, %v1074
        %v1082 = vpack.c.b16 %v1077, %v1076
        %v1083 = vpack.c.b16 %v1079, %v1078
        %1088 = vxpose.xlu0.c.b16.start [1/8] %v1080, 128
        %1089 = vxpose.xlu0.c.b16.cont [2/8] 0, 128
        %1090 = vxpose.xlu0.c.b16.cont [3/8] 0, 128
        %1091 = vxpose.xlu0.c.b16.cont [4/8] 0, 128
        %1092 = vxpose.xlu0.c.b16.cont [5/8] 0, 128
        %1093 = vxpose.xlu0.c.b16.cont [6/8] 0, 128
        %1094 = vxpose.xlu0.c.b16.cont [7/8] 0, 128
        %1095 = vxpose.xlu0.c.b16.end [8/8] 0, 128
        %v1096 = vpop.trf.xlu0
        %v1097 = vpop.trf.xlu0
        %v1098 = vpop.trf.xlu0
        %v1099 = vpop.trf.xlu0
        %v1100 = vpop.trf.xlu0
        %v1101 = vpop.trf.xlu0
        %v1102 = vpop.trf.xlu0
        %v1103 = vpop.trf.xlu0
        %1104 = vxpose.xlu0.c.b16.start [1/8] %v1081, 128
        %1105 = vxpose.xlu0.c.b16.cont [2/8] 0, 128
        %1106 = vxpose.xlu0.c.b16.cont [3/8] 0, 128
        %1107 = vxpose.xlu0.c.b16.cont [4/8] 0, 128
        %1108 = vxpose.xlu0.c.b16.cont [5/8] 0, 128
        %1109 = vxpose.xlu0.c.b16.cont [6/8] 0, 128
        %1110 = vxpose.xlu0.c.b16.cont [7/8] 0, 128
        %1111 = vxpose.xlu0.c.b16.end [8/8] 0, 128
        %v1112 = vpop.trf.xlu0
        %v1113 = vpop.trf.xlu0
        %v1114 = vpop.trf.xlu0
        %v1115 = vpop.trf.xlu0
        %v1116 = vpop.trf.xlu0
        %v1117 = vpop.trf.xlu0
        %v1118 = vpop.trf.xlu0
        %v1119 = vpop.trf.xlu0
        %1120 = vxpose.xlu0.c.b16.start [1/8] %v1082, 128
        %1121 = vxpose.xlu0.c.b16.cont [2/8] 0, 128
        %1122 = vxpose.xlu0.c.b16.cont [3/8] 0, 128
        %1123 = vxpose.xlu0.c.b16.cont [4/8] 0, 128
        %1124 = vxpose.xlu0.c.b16.cont [5/8] 0, 128
        %1125 = vxpose.xlu0.c.b16.cont [6/8] 0, 128
        %1126 = vxpose.xlu0.c.b16.cont [7/8] 0, 128
        %1127 = vxpose.xlu0.c.b16.end [8/8] 0, 128
        %v1128 = vpop.trf.xlu0
        %v1129 = vpop.trf.xlu0
        %v1130 = vpop.trf.xlu0
        %v1131 = vpop.trf.xlu0
        %v1132 = vpop.trf.xlu0
        %v1133 = vpop.trf.xlu0
        %v1134 = vpop.trf.xlu0
        %v1135 = vpop.trf.xlu0
        %1136 = vxpose.xlu0.c.b16.start [1/8] %v1083, 128
        %1137 = vxpose.xlu0.c.b16.cont [2/8] 0, 128
        %1138 = vxpose.xlu0.c.b16.cont [3/8] 0, 128
        %1139 = vxpose.xlu0.c.b16.cont [4/8] 0, 128
        %1140 = vxpose.xlu0.c.b16.cont [5/8] 0, 128
        %1141 = vxpose.xlu0.c.b16.cont [6/8] 0, 128
        %1142 = vxpose.xlu0.c.b16.cont [7/8] 0, 128
        %1143 = vxpose.xlu0.c.b16.end [8/8] 0, 128
        %v1144 = vpop.trf.xlu0
        %v1145 = vpop.trf.xlu0
        %v1146 = vpop.trf.xlu0
        %v1147 = vpop.trf.xlu0
        %v1148 = vpop.trf.xlu0
        %v1149 = vpop.trf.xlu0
        %v1150 = vpop.trf.xlu0
        %v1151 = vpop.trf.xlu0
        %vm1152 = vcmask 261120
        %v1154 = vsel %vm1152, %v1023, 0
        %1156 = vmatpush.bf16.msra.mxu0 0
        %1157 = vmatpush.bf16.msra.mxu0 0
        %1158 = vmatpush.bf16.msra.mxu0 0
        %1159 = vmatpush.bf16.msra.mxu0 0
        %1160 = vmatpush.bf16.msra.mxu0 0
        %1161 = vmatpush.bf16.msra.mxu0 0
        %1162 = vmatpush.bf16.msra.mxu0 %v1097
        %1163 = vmatpush.bf16.msra.mxu0 %v1096
        %1164 = vmatmul.bf16.gmra.mxu0 %v1154
        %v1165 = vpop.f32.mrf.mxu0
        %v1166 = vadd.f32 0.0, %v1165
        %v1167 = vpop.f32.mrf.mxu0
        %1168 = vdwg.mxu0
        %v1170 = vsel %vm1152, %v1035, 0
        %1172 = vmatpush.bf16.msra.mxu0 0
        %1173 = vmatpush.bf16.msra.mxu0 0
        %1174 = vmatpush.bf16.msra.mxu0 0
        %1175 = vmatpush.bf16.msra.mxu0 0
        %1176 = vmatpush.bf16.msra.mxu0 0
        %1177 = vmatpush.bf16.msra.mxu0 0
        %1178 = vmatpush.bf16.msra.mxu0 %v1113
        %1179 = vmatpush.bf16.msra.mxu0 %v1112
        %1180 = vmatmul.bf16.gmra.mxu0 %v1170
        %v1181 = vpop.f32.mrf.mxu0
        %v1182 = vadd.f32 0.0, %v1181
        %v1183 = vpop.f32.mrf.mxu0
        %1184 = vdwg.mxu0
        %v1186 = vsel %vm1152, %v1037, 0
        %1188 = vmatpush.bf16.msra.mxu0 0
        %1189 = vmatpush.bf16.msra.mxu0 0
        %1190 = vmatpush.bf16.msra.mxu0 0
        %1191 = vmatpush.bf16.msra.mxu0 0
        %1192 = vmatpush.bf16.msra.mxu0 0
        %1193 = vmatpush.bf16.msra.mxu0 0
        %1194 = vmatpush.bf16.msra.mxu0 %v1129
        %1195 = vmatpush.bf16.msra.mxu0 %v1128
        %1196 = vmatmul.bf16.gmra.mxu0 %v1186
        %v1197 = vpop.f32.mrf.mxu0
        %v1198 = vadd.f32 0.0, %v1197
        %v1199 = vpop.f32.mrf.mxu0
        %1200 = vdwg.mxu0
        %v1202 = vsel %vm1152, %v1039, 0
        %1204 = vmatpush.bf16.msra.mxu0 0
        %1205 = vmatpush.bf16.msra.mxu0 0
        %1206 = vmatpush.bf16.msra.mxu0 0
        %1207 = vmatpush.bf16.msra.mxu0 0
        %1208 = vmatpush.bf16.msra.mxu0 0
        %1209 = vmatpush.bf16.msra.mxu0 0
        %1210 = vmatpush.bf16.msra.mxu0 %v1145
        %1211 = vmatpush.bf16.msra.mxu0 %v1144
        %1212 = vmatmul.bf16.gmra.mxu0 %v1202
        %v1213 = vpop.f32.mrf.mxu0
        %v1214 = vadd.f32 0.0, %v1213
        %v1215 = vpop.f32.mrf.mxu0
        %1216 = vdwg.mxu0
        %vm1217 = vcmask 130048
        %v1218 = vsel %vm1217, %v1166, -inf
        %1219 = vmax.xlane.f32.xlu0 %v1218
        %v1220 = vpop.xlane.xlu0 %1219
        %v1221 = vsel %vm1217, %v1182, -inf
        %1222 = vmax.xlane.f32.xlu0 %v1221
        %v1223 = vpop.xlane.xlu0 %1222
        %v1224 = vsel %vm1217, %v1198, -inf
        %1225 = vmax.xlane.f32.xlu0 %v1224
        %v1226 = vpop.xlane.xlu0 %1225
        %v1227 = vsel %vm1217, %v1214, -inf
        %1228 = vmax.xlane.f32.xlu0 %v1227
        %v1229 = vpop.xlane.xlu0 %1228
        %v1230 = vsub.f32 %v1166, %v1220
        %v1231 = vsub.f32 %v1182, %v1223
        %v1232 = vsub.f32 %v1198, %v1226
        %v1233 = vsub.f32 %v1214, %v1229
        %v1234 = vmul.f32 %v1230, 1.442695
        %v1235 = vpow.pop %v1234
        %v1236 = vmul.f32 %v1231, 1.442695
        %v1237 = vpow.pop %v1236
        %v1238 = vmul.f32 %v1232, 1.442695
        %v1239 = vpow.pop %v1238
        %v1240 = vmul.f32 %v1233, 1.442695
        %v1241 = vpow.pop %v1240
        %v1242 = vsel %vm1217, %v1235, 0.0
        %1243 = vadd.xlane.f32.xlu0 %v1242
        %v1244 = vpop.xlane.xlu0 %1243
        %v1245 = vsel %vm1217, %v1237, 0.0
        %1246 = vadd.xlane.f32.xlu0 %v1245
        %v1247 = vpop.xlane.xlu0 %1246
        %v1248 = vsel %vm1217, %v1239, 0.0
        %1249 = vadd.xlane.f32.xlu0 %v1248
        %v1250 = vpop.xlane.xlu0 %1249
        %v1251 = vsel %vm1217, %v1241, 0.0
        %1252 = vadd.xlane.f32.xlu0 %v1251
        %v1253 = vpop.xlane.xlu0 %1252
        %v1254 = vrcp.pop %v1244
        %v1255 = vrcp.pop %v1247
        %v1256 = vrcp.pop %v1250
        %v1257 = vrcp.pop %v1253
        %v1258 = vmul.f32 %v1235, %v1254
        %v1259 = vmul.f32 %v1237, %v1255
        %v1260 = vmul.f32 %v1239, %v1256
        %v1261 = vmul.f32 %v1241, %v1257
        %v1262 = vpack.c.bf16 %v1258, %v1258
        %v1263 = vpack.c.bf16 %v1259, %v1259
        %v1264 = vpack.c.bf16 %v1260, %v1260
        %v1265 = vpack.c.bf16 %v1261, %v1261
        %v1266 = vunpack.c.l.b16 %v1056
        %v1267 = vunpack.c.l.b16 %v1057
        %v1268 = vunpack.c.l.b16 %v1061
        %v1269 = vunpack.c.l.b16 %v1063
        %v1270 = vunpack.c.l.b16 %v1065
        %v1271 = vunpack.c.l.b16 %v1067
        %v1272 = vunpack.c.l.b16 %v1069
        %v1273 = vunpack.c.l.b16 %v1071
        %v1274 = vpack.c.b16 %v1267, %v1266
        %v1275 = vpack.c.b16 %v1269, %v1268
        %v1276 = vpack.c.b16 %v1271, %v1270
        %v1277 = vpack.c.b16 %v1273, %v1272
        %1282 = vxpose.xlu0.c.b16.start [1/8] %v1274, 128
        %1283 = vxpose.xlu0.c.b16.cont [2/8] 0, 128
        %1284 = vxpose.xlu0.c.b16.cont [3/8] 0, 128
        %1285 = vxpose.xlu0.c.b16.cont [4/8] 0, 128
        %1286 = vxpose.xlu0.c.b16.cont [5/8] 0, 128
        %1287 = vxpose.xlu0.c.b16.cont [6/8] 0, 128
        %1288 = vxpose.xlu0.c.b16.cont [7/8] 0, 128
        %1289 = vxpose.xlu0.c.b16.end [8/8] 0, 128
        %v1290 = vpop.trf.xlu0
        %v1291 = vpop.trf.xlu0
        %v1292 = vpop.trf.xlu0
        %v1293 = vpop.trf.xlu0
        %v1294 = vpop.trf.xlu0
        %v1295 = vpop.trf.xlu0
        %v1296 = vpop.trf.xlu0
        %v1297 = vpop.trf.xlu0
        %1298 = vxpose.xlu0.c.b16.start [1/8] %v1275, 128
        %1299 = vxpose.xlu0.c.b16.cont [2/8] 0, 128
        %1300 = vxpose.xlu0.c.b16.cont [3/8] 0, 128
        %1301 = vxpose.xlu0.c.b16.cont [4/8] 0, 128
        %1302 = vxpose.xlu0.c.b16.cont [5/8] 0, 128
        %1303 = vxpose.xlu0.c.b16.cont [6/8] 0, 128
        %1304 = vxpose.xlu0.c.b16.cont [7/8] 0, 128
        %1305 = vxpose.xlu0.c.b16.end [8/8] 0, 128
        %v1306 = vpop.trf.xlu0
        %v1307 = vpop.trf.xlu0
        %v1308 = vpop.trf.xlu0
        %v1309 = vpop.trf.xlu0
        %v1310 = vpop.trf.xlu0
        %v1311 = vpop.trf.xlu0
        %v1312 = vpop.trf.xlu0
        %v1313 = vpop.trf.xlu0
        %1314 = vxpose.xlu0.c.b16.start [1/8] %v1276, 128
        %1315 = vxpose.xlu0.c.b16.cont [2/8] 0, 128
        %1316 = vxpose.xlu0.c.b16.cont [3/8] 0, 128
        %1317 = vxpose.xlu0.c.b16.cont [4/8] 0, 128
        %1318 = vxpose.xlu0.c.b16.cont [5/8] 0, 128
        %1319 = vxpose.xlu0.c.b16.cont [6/8] 0, 128
        %1320 = vxpose.xlu0.c.b16.cont [7/8] 0, 128
        %1321 = vxpose.xlu0.c.b16.end [8/8] 0, 128
        %v1322 = vpop.trf.xlu0
        %v1323 = vpop.trf.xlu0
        %v1324 = vpop.trf.xlu0
        %v1325 = vpop.trf.xlu0
        %v1326 = vpop.trf.xlu0
        %v1327 = vpop.trf.xlu0
        %v1328 = vpop.trf.xlu0
        %v1329 = vpop.trf.xlu0
        %1330 = vxpose.xlu0.c.b16.start [1/8] %v1277, 128
        %1331 = vxpose.xlu0.c.b16.cont [2/8] 0, 128
        %1332 = vxpose.xlu0.c.b16.cont [3/8] 0, 128
        %1333 = vxpose.xlu0.c.b16.cont [4/8] 0, 128
        %1334 = vxpose.xlu0.c.b16.cont [5/8] 0, 128
        %1335 = vxpose.xlu0.c.b16.cont [6/8] 0, 128
        %1336 = vxpose.xlu0.c.b16.cont [7/8] 0, 128
        %1337 = vxpose.xlu0.c.b16.end [8/8] 0, 128
        %v1338 = vpop.trf.xlu0
        %v1339 = vpop.trf.xlu0
        %v1340 = vpop.trf.xlu0
        %v1341 = vpop.trf.xlu0
        %v1342 = vpop.trf.xlu0
        %v1343 = vpop.trf.xlu0
        %v1344 = vpop.trf.xlu0
        %v1345 = vpop.trf.xlu0
        %v1347 = vsel %vm1217, %v1290, 0
        %v1350 = vsel %vm1217, %v1291, 0
        %v1353 = vsel %vm1217, %v1262, 0
        %1355 = vmatpush.bf16.xpose.msra.mxu0 0
        %1356 = vmatpush.bf16.xpose.msra.mxu0 0
        %1357 = vmatpush.bf16.xpose.msra.mxu0 0
        %1358 = vmatpush.bf16.xpose.msra.mxu0 0
        %1359 = vmatpush.bf16.xpose.msra.mxu0 0
        %1360 = vmatpush.bf16.xpose.msra.mxu0 0
        %1361 = vmatpush.bf16.xpose.msra.mxu0 0
        %1362 = vmatpush.bf16.xpose.msra.mxu0 %v1353
        %1363 = vmatmul.bf16.gmra.mxu0 %v1347
        %v1364 = vpop.f32.mrf.mxu0
        %v1365 = vadd.f32 0.0, %v1364
        %v1366 = vpop.f32.mrf.mxu0
        %v1367 = vadd.f32 0.0, %v1366
        %1368 = vmatmul.bf16.gmra.mxu0 %v1350
        %v1369 = vpop.f32.mrf.mxu0
        %v1370 = vadd.f32 0.0, %v1369
        %v1371 = vpop.f32.mrf.mxu0
        %v1372 = vadd.f32 0.0, %v1371
        %1373 = vdwg.mxu0
        %v1375 = vsel %vm1217, %v1306, 0
        %v1378 = vsel %vm1217, %v1307, 0
        %v1381 = vsel %vm1217, %v1263, 0
        %1383 = vmatpush.bf16.xpose.msra.mxu0 0
        %1384 = vmatpush.bf16.xpose.msra.mxu0 0
        %1385 = vmatpush.bf16.xpose.msra.mxu0 0
        %1386 = vmatpush.bf16.xpose.msra.mxu0 0
        %1387 = vmatpush.bf16.xpose.msra.mxu0 0
        %1388 = vmatpush.bf16.xpose.msra.mxu0 0
        %1389 = vmatpush.bf16.xpose.msra.mxu0 0
        %1390 = vmatpush.bf16.xpose.msra.mxu0 %v1381
        %1391 = vmatmul.bf16.gmra.mxu0 %v1375
        %v1392 = vpop.f32.mrf.mxu0
        %v1393 = vadd.f32 0.0, %v1392
        %v1394 = vpop.f32.mrf.mxu0
        %v1395 = vadd.f32 0.0, %v1394
        %1396 = vmatmul.bf16.gmra.mxu0 %v1378
        %v1397 = vpop.f32.mrf.mxu0
        %v1398 = vadd.f32 0.0, %v1397
        %v1399 = vpop.f32.mrf.mxu0
        %v1400 = vadd.f32 0.0, %v1399
        %1401 = vdwg.mxu0
        %v1403 = vsel %vm1217, %v1322, 0
        %v1406 = vsel %vm1217, %v1323, 0
        %v1409 = vsel %vm1217, %v1264, 0
        %1411 = vmatpush.bf16.xpose.msra.mxu0 0
        %1412 = vmatpush.bf16.xpose.msra.mxu0 0
        %1413 = vmatpush.bf16.xpose.msra.mxu0 0
        %1414 = vmatpush.bf16.xpose.msra.mxu0 0
        %1415 = vmatpush.bf16.xpose.msra.mxu0 0
        %1416 = vmatpush.bf16.xpose.msra.mxu0 0
        %1417 = vmatpush.bf16.xpose.msra.mxu0 0
        %1418 = vmatpush.bf16.xpose.msra.mxu0 %v1409
        %1419 = vmatmul.bf16.gmra.mxu0 %v1403
        %v1420 = vpop.f32.mrf.mxu0
        %v1421 = vadd.f32 0.0, %v1420
        %v1422 = vpop.f32.mrf.mxu0
        %v1423 = vadd.f32 0.0, %v1422
        %1424 = vmatmul.bf16.gmra.mxu0 %v1406
        %v1425 = vpop.f32.mrf.mxu0
        %v1426 = vadd.f32 0.0, %v1425
        %v1427 = vpop.f32.mrf.mxu0
        %v1428 = vadd.f32 0.0, %v1427
        %1429 = vdwg.mxu0
        %v1431 = vsel %vm1217, %v1338, 0
        %v1434 = vsel %vm1217, %v1339, 0
        %v1437 = vsel %vm1217, %v1265, 0
        %1439 = vmatpush.bf16.xpose.msra.mxu0 0
        %1440 = vmatpush.bf16.xpose.msra.mxu0 0
        %1441 = vmatpush.bf16.xpose.msra.mxu0 0
        %1442 = vmatpush.bf16.xpose.msra.mxu0 0
        %1443 = vmatpush.bf16.xpose.msra.mxu0 0
        %1444 = vmatpush.bf16.xpose.msra.mxu0 0
        %1445 = vmatpush.bf16.xpose.msra.mxu0 0
        %1446 = vmatpush.bf16.xpose.msra.mxu0 %v1437
        %1447 = vmatmul.bf16.gmra.mxu0 %v1431
        %v1448 = vpop.f32.mrf.mxu0
        %v1449 = vadd.f32 0.0, %v1448
        %v1450 = vpop.f32.mrf.mxu0
        %v1451 = vadd.f32 0.0, %v1450
        %1452 = vmatmul.bf16.gmra.mxu0 %v1434
        %v1453 = vpop.f32.mrf.mxu0
        %v1454 = vadd.f32 0.0, %v1453
        %v1455 = vpop.f32.mrf.mxu0
        %v1456 = vadd.f32 0.0, %v1455
        %1457 = vdwg.mxu0
        %1458 = vxpose.xlu0.b32.start [1/16] %v1365, 128
        %1459 = vxpose.xlu0.b32.cont [2/16] %v1367, 128
        %1460 = vxpose.xlu0.b32.cont [3/16] %v1370, 128
        %1461 = vxpose.xlu0.b32.cont [4/16] %v1372, 128
        %1462 = vxpose.xlu0.b32.cont [5/16] 0.0, 128
        %1463 = vxpose.xlu0.b32.cont [6/16] 0.0, 128
        %1464 = vxpose.xlu0.b32.cont [7/16] 0.0, 128
        %1465 = vxpose.xlu0.b32.cont [8/16] 0.0, 128
        %1466 = vxpose.xlu0.b32.cont [9/16] 0.0, 128
        %1467 = vxpose.xlu0.b32.cont [10/16] 0.0, 128
        %1468 = vxpose.xlu0.b32.cont [11/16] 0.0, 128
        %1469 = vxpose.xlu0.b32.cont [12/16] 0.0, 128
        %1470 = vxpose.xlu0.b32.cont [13/16] 0.0, 128
        %1471 = vxpose.xlu0.b32.cont [14/16] 0.0, 128
        %1472 = vxpose.xlu0.b32.cont [15/16] 0.0, 128
        %1473 = vxpose.xlu0.b32.end [16/16] 0.0, 128
        %v1474 = vpop.trf.xlu0
        %v1475 = vpop.trf.xlu0
        %v1476 = vpop.trf.xlu0
        %v1477 = vpop.trf.xlu0
        %v1478 = vpop.trf.xlu0
        %v1479 = vpop.trf.xlu0
        %v1480 = vpop.trf.xlu0
        %v1481 = vpop.trf.xlu0
        %v1482 = vpop.trf.xlu0
        %v1483 = vpop.trf.xlu0
        %v1484 = vpop.trf.xlu0
        %v1485 = vpop.trf.xlu0
        %v1486 = vpop.trf.xlu0
        %v1487 = vpop.trf.xlu0
        %v1488 = vpop.trf.xlu0
        %v1489 = vpop.trf.xlu0
        %1490 = vxpose.xlu0.b32.start [1/16] %v1393, 128
        %1491 = vxpose.xlu0.b32.cont [2/16] %v1395, 128
        %1492 = vxpose.xlu0.b32.cont [3/16] %v1398, 128
        %1493 = vxpose.xlu0.b32.cont [4/16] %v1400, 128
        %1494 = vxpose.xlu0.b32.cont [5/16] 0.0, 128
        %1495 = vxpose.xlu0.b32.cont [6/16] 0.0, 128
        %1496 = vxpose.xlu0.b32.cont [7/16] 0.0, 128
        %1497 = vxpose.xlu0.b32.cont [8/16] 0.0, 128
        %1498 = vxpose.xlu0.b32.cont [9/16] 0.0, 128
        %1499 = vxpose.xlu0.b32.cont [10/16] 0.0, 128
        %1500 = vxpose.xlu0.b32.cont [11/16] 0.0, 128
        %1501 = vxpose.xlu0.b32.cont [12/16] 0.0, 128
        %1502 = vxpose.xlu0.b32.cont [13/16] 0.0, 128
        %1503 = vxpose.xlu0.b32.cont [14/16] 0.0, 128
        %1504 = vxpose.xlu0.b32.cont [15/16] 0.0, 128
        %1505 = vxpose.xlu0.b32.end [16/16] 0.0, 128
        %v1506 = vpop.trf.xlu0
        %v1507 = vpop.trf.xlu0
        %v1508 = vpop.trf.xlu0
        %v1509 = vpop.trf.xlu0
        %v1510 = vpop.trf.xlu0
        %v1511 = vpop.trf.xlu0
        %v1512 = vpop.trf.xlu0
        %v1513 = vpop.trf.xlu0
        %v1514 = vpop.trf.xlu0
        %v1515 = vpop.trf.xlu0
        %v1516 = vpop.trf.xlu0
        %v1517 = vpop.trf.xlu0
        %v1518 = vpop.trf.xlu0
        %v1519 = vpop.trf.xlu0
        %v1520 = vpop.trf.xlu0
        %v1521 = vpop.trf.xlu0
        %1522 = vxpose.xlu0.b32.start [1/16] %v1421, 128
        %1523 = vxpose.xlu0.b32.cont [2/16] %v1423, 128
        %1524 = vxpose.xlu0.b32.cont [3/16] %v1426, 128
        %1525 = vxpose.xlu0.b32.cont [4/16] %v1428, 128
        %1526 = vxpose.xlu0.b32.cont [5/16] 0.0, 128
        %1527 = vxpose.xlu0.b32.cont [6/16] 0.0, 128
        %1528 = vxpose.xlu0.b32.cont [7/16] 0.0, 128
        %1529 = vxpose.xlu0.b32.cont [8/16] 0.0, 128
        %1530 = vxpose.xlu0.b32.cont [9/16] 0.0, 128
        %1531 = vxpose.xlu0.b32.cont [10/16] 0.0, 128
        %1532 = vxpose.xlu0.b32.cont [11/16] 0.0, 128
        %1533 = vxpose.xlu0.b32.cont [12/16] 0.0, 128
        %1534 = vxpose.xlu0.b32.cont [13/16] 0.0, 128
        %1535 = vxpose.xlu0.b32.cont [14/16] 0.0, 128
        %1536 = vxpose.xlu0.b32.cont [15/16] 0.0, 128
        %1537 = vxpose.xlu0.b32.end [16/16] 0.0, 128
        %v1538 = vpop.trf.xlu0
        %v1539 = vpop.trf.xlu0
        %v1540 = vpop.trf.xlu0
        %v1541 = vpop.trf.xlu0
        %v1542 = vpop.trf.xlu0
        %v1543 = vpop.trf.xlu0
        %v1544 = vpop.trf.xlu0
        %v1545 = vpop.trf.xlu0
        %v1546 = vpop.trf.xlu0
        %v1547 = vpop.trf.xlu0
        %v1548 = vpop.trf.xlu0
        %v1549 = vpop.trf.xlu0
        %v1550 = vpop.trf.xlu0
        %v1551 = vpop.trf.xlu0
        %v1552 = vpop.trf.xlu0
        %v1553 = vpop.trf.xlu0
        %1554 = vxpose.xlu0.b32.start [1/16] %v1449, 128
        %1555 = vxpose.xlu0.b32.cont [2/16] %v1451, 128
        %1556 = vxpose.xlu0.b32.cont [3/16] %v1454, 128
        %1557 = vxpose.xlu0.b32.cont [4/16] %v1456, 128
        %1558 = vxpose.xlu0.b32.cont [5/16] 0.0, 128
        %1559 = vxpose.xlu0.b32.cont [6/16] 0.0, 128
        %1560 = vxpose.xlu0.b32.cont [7/16] 0.0, 128
        %1561 = vxpose.xlu0.b32.cont [8/16] 0.0, 128
        %1562 = vxpose.xlu0.b32.cont [9/16] 0.0, 128
        %1563 = vxpose.xlu0.b32.cont [10/16] 0.0, 128
        %1564 = vxpose.xlu0.b32.cont [11/16] 0.0, 128
        %1565 = vxpose.xlu0.b32.cont [12/16] 0.0, 128
        %1566 = vxpose.xlu0.b32.cont [13/16] 0.0, 128
        %1567 = vxpose.xlu0.b32.cont [14/16] 0.0, 128
        %1568 = vxpose.xlu0.b32.cont [15/16] 0.0, 128
        %1569 = vxpose.xlu0.b32.end [16/16] 0.0, 128
        %v1570 = vpop.trf.xlu0
        %v1571 = vpop.trf.xlu0
        %v1572 = vpop.trf.xlu0
        %v1573 = vpop.trf.xlu0
        %v1574 = vpop.trf.xlu0
        %v1575 = vpop.trf.xlu0
        %v1576 = vpop.trf.xlu0
        %v1577 = vpop.trf.xlu0
        %v1578 = vpop.trf.xlu0
        %v1579 = vpop.trf.xlu0
        %v1580 = vpop.trf.xlu0
        %v1581 = vpop.trf.xlu0
        %v1582 = vpop.trf.xlu0
        %v1583 = vpop.trf.xlu0
        %v1584 = vpop.trf.xlu0
        %v1585 = vpop.trf.xlu0
        %v1586 = vrot.slane %v1538, 4
        %vm1587 = vcmask 1047556
        %v1588 = vsel %vm1587, %v1586, %v1474
        %v1589 = vrot.slane %v1474, 4
        %v1590 = vsel %vm1587, %v1538, %v1589
        %v1592 = vunpack.c.l.s4 1983009808
        %v1593 = vunpack.c.0.s8 %v1592
        %v1594 = vperm.slane %v1588, %v1593
        %v1596 = vunpack.c.l.s4 1983009808
        %v1597 = vunpack.c.0.s8 %v1596
        %v1598 = vperm.slane %v1590, %v1597
        %v1599 = vrot.slane %v1570, 4
        %v1600 = vsel %vm1587, %v1599, %v1506
        %v1601 = vrot.slane %v1506, 4
        %v1602 = vsel %vm1587, %v1570, %v1601
        %v1604 = vunpack.c.l.s4 1983009808
        %v1605 = vunpack.c.0.s8 %v1604
        %v1606 = vperm.slane %v1600, %v1605
        %v1608 = vunpack.c.l.s4 1983009808
        %v1609 = vunpack.c.0.s8 %v1608
        %v1610 = vperm.slane %v1602, %v1609
        %v1611 = vrot.slane %v1606, 4
        %v1612 = vsel %vm1587, %v1611, %v1594
        %v1613 = vrot.slane %v1594, 4
        %v1614 = vsel %vm1587, %v1606, %v1613
        %v1616 = vunpack.c.l.s4 1934713408
        %v1617 = vunpack.c.0.s8 %v1616
        %v1618 = vperm.slane %v1612, %v1617
        %v1620 = vunpack.c.l.s4 1934713408
        %v1621 = vunpack.c.0.s8 %v1620
        %v1622 = vperm.slane %v1614, %v1621
        %v1623 = vrot.slane %v1610, 4
        %v1624 = vsel %vm1587, %v1623, %v1598
        %v1625 = vrot.slane %v1598, 4
        %v1626 = vsel %vm1587, %v1610, %v1625
        %v1628 = vunpack.c.l.s4 1934713408
        %v1629 = vunpack.c.0.s8 %v1628
        %v1630 = vperm.slane %v1624, %v1629
        %v1632 = vunpack.c.l.s4 1934713408
        %v1633 = vunpack.c.0.s8 %v1632
        %v1634 = vperm.slane %v1626, %v1633
        %v1635 = vrot.slane %v1618, 4
        %v1636 = vsel %vm1587, 0.0, %v1635
        %v1637 = vrot.slane %v1622, 4
        %v1638 = vsel %vm1587, 0.0, %v1637
        %v1639 = vrot.slane %v1630, 4
        %v1640 = vsel %vm1587, 0.0, %v1639
        %v1641 = vrot.slane %v1634, 4
        %v1642 = vsel %vm1587, 0.0, %v1641
        %v1643 = vsel %vm1587, %v1637, %v1618
        %v1645 = vunpack.c.l.s4 1983009808
        %v1646 = vunpack.c.0.s8 %v1645
        %v1647 = vperm.slane %v1643, %v1646
        %v1648 = vrot.slane %v1638, 4
        %v1649 = vsel %vm1587, %v1648, %v1636
        %v1651 = vunpack.c.l.s4 1983009808
        %v1652 = vunpack.c.0.s8 %v1651
        %v1653 = vperm.slane %v1649, %v1652
        %v1654 = vsel %vm1587, %v1641, %v1630
        %v1656 = vunpack.c.l.s4 1983009808
        %v1657 = vunpack.c.0.s8 %v1656
        %v1658 = vperm.slane %v1654, %v1657
        %v1659 = vrot.slane %v1642, 4
        %v1660 = vsel %vm1587, %v1659, %v1640
        %v1662 = vunpack.c.l.s4 1983009808
        %v1663 = vunpack.c.0.s8 %v1662
        %v1664 = vperm.slane %v1660, %v1663
        %v1665 = vrot.slane %v1653, 4
        %v1666 = vsel %vm1587, %v1665, %v1647
        %v1667 = vrot.slane %v1647, 4
        %v1668 = vsel %vm1587, %v1653, %v1667
        %v1670 = vunpack.c.l.s4 1934713408
        %v1671 = vunpack.c.0.s8 %v1670
        %v1672 = vperm.slane %v1666, %v1671
        %v1674 = vunpack.c.l.s4 1934713408
        %v1675 = vunpack.c.0.s8 %v1674
        %v1676 = vperm.slane %v1668, %v1675
        %v1677 = vrot.slane %v1664, 4
        %v1678 = vsel %vm1587, %v1677, %v1658
        %v1679 = vrot.slane %v1658, 4
        %v1680 = vsel %vm1587, %v1664, %v1679
        %v1682 = vunpack.c.l.s4 1934713408
        %v1683 = vunpack.c.0.s8 %v1682
        %v1684 = vperm.slane %v1678, %v1683
        %v1686 = vunpack.c.l.s4 1934713408
        %v1687 = vunpack.c.0.s8 %v1686
        %v1688 = vperm.slane %v1680, %v1687
        %v1689 = vrot.slane %v1684, 4
        %v1690 = vsel %vm1587, %v1689, %v1672
        %v1691 = vrot.slane %v1672, 4
        %v1692 = vsel %vm1587, %v1684, %v1691
        %v1693 = vrot.slane %v1688, 4
        %v1694 = vsel %vm1587, %v1693, %v1676
        %v1695 = vrot.slane %v1676, 4
        %v1696 = vsel %vm1587, %v1688, %v1695
        %1698 = vrot.lane.b32.xlu0 %v1692, 32
        %v1699 = vpop.permute.xlu0 %1698
        %1702 = vrot.lane.b32.xlu0 %v1694, 64
        %v1703 = vpop.permute.xlu0 %1702
        %1706 = vrot.lane.b32.xlu0 %v1696, 96
        %v1707 = vpop.permute.xlu0 %1706
        %v1709 = vsel %vm1152, %v1690, %v1699
        %vm1710 = vcmask 523264
        %v1711 = vsel %vm1710, %v1709, %v1703
        %vm1712 = vcmask 785408
        %v1713 = vsel %vm1712, %v1711, %v1707
        %1714 = vst [vmem:[%s235] sm:$0xff] %v1713
        %v1715 = vrot.slane %v1023, 4
        %v1716 = vrot.slane %v1035, 4
        %v1717 = vrot.slane %v1037, 4
        %v1718 = vrot.slane %v1039, 4
        %v1719 = vld [vmem:[#allocation2 + $0x4] sm:$0xf]
        %v1720 = vld [vmem:[#allocation2 + $0xc] sm:$0xf]
        %1723 = vrot.lane.b32.xlu0 %v1719, 96
        %v1724 = vpop.permute.xlu0 %1723
        %1725 = vrot.lane.b32.xlu0 %v1720, 96
        %v1726 = vpop.permute.xlu0 %1725
        %1727 = vrot.lane.b32.xlu0 %v1719, 64
        %v1728 = vpop.permute.xlu0 %1727
        %1729 = vrot.lane.b32.xlu0 %v1720, 64
        %v1730 = vpop.permute.xlu0 %1729
        %1731 = vrot.lane.b32.xlu0 %v1719, 32
        %v1732 = vpop.permute.xlu0 %1731
        %1733 = vrot.lane.b32.xlu0 %v1720, 32
        %v1734 = vpop.permute.xlu0 %1733
        %v1735 = vld [vmem:[#allocation3 + $0x4] sm:$0xf]
        %v1736 = vld [vmem:[#allocation3 + $0xc] sm:$0xf]
        %1739 = vrot.lane.b32.xlu0 %v1735, 96
        %v1740 = vpop.permute.xlu0 %1739
        %1741 = vrot.lane.b32.xlu0 %v1736, 96
        %v1742 = vpop.permute.xlu0 %1741
        %1743 = vrot.lane.b32.xlu0 %v1735, 64
        %v1744 = vpop.permute.xlu0 %1743
        %1745 = vrot.lane.b32.xlu0 %v1736, 64
        %v1746 = vpop.permute.xlu0 %1745
        %1747 = vrot.lane.b32.xlu0 %v1735, 32
        %v1748 = vpop.permute.xlu0 %1747
        %1749 = vrot.lane.b32.xlu0 %v1736, 32
        %v1750 = vpop.permute.xlu0 %1749
        %v1751 = vunpack.c.l.b16 %v1719
        %v1752 = vunpack.c.l.b16 %v1720
        %v1753 = vunpack.c.l.b16 %v1724
        %v1754 = vunpack.c.l.b16 %v1726
        %v1755 = vunpack.c.l.b16 %v1728
        %v1756 = vunpack.c.l.b16 %v1730
        %v1757 = vunpack.c.l.b16 %v1732
        %v1758 = vunpack.c.l.b16 %v1734
        %v1759 = vpack.c.b16 %v1752, %v1751
        %v1760 = vpack.c.b16 %v1754, %v1753
        %v1761 = vpack.c.b16 %v1756, %v1755
        %v1762 = vpack.c.b16 %v1758, %v1757
        %1767 = vxpose.xlu0.c.b16.start [1/8] %v1759, 128
        %1768 = vxpose.xlu0.c.b16.cont [2/8] 0, 128
        %1769 = vxpose.xlu0.c.b16.cont [3/8] 0, 128
        %1770 = vxpose.xlu0.c.b16.cont [4/8] 0, 128
        %1771 = vxpose.xlu0.c.b16.cont [5/8] 0, 128
        %1772 = vxpose.xlu0.c.b16.cont [6/8] 0, 128
        %1773 = vxpose.xlu0.c.b16.cont [7/8] 0, 128
        %1774 = vxpose.xlu0.c.b16.end [8/8] 0, 128
        %v1775 = vpop.trf.xlu0
        %v1776 = vpop.trf.xlu0
        %v1777 = vpop.trf.xlu0
        %v1778 = vpop.trf.xlu0
        %v1779 = vpop.trf.xlu0
        %v1780 = vpop.trf.xlu0
        %v1781 = vpop.trf.xlu0
        %v1782 = vpop.trf.xlu0
        %1783 = vxpose.xlu0.c.b16.start [1/8] %v1760, 128
        %1784 = vxpose.xlu0.c.b16.cont [2/8] 0, 128
        %1785 = vxpose.xlu0.c.b16.cont [3/8] 0, 128
        %1786 = vxpose.xlu0.c.b16.cont [4/8] 0, 128
        %1787 = vxpose.xlu0.c.b16.cont [5/8] 0, 128
        %1788 = vxpose.xlu0.c.b16.cont [6/8] 0, 128
        %1789 = vxpose.xlu0.c.b16.cont [7/8] 0, 128
        %1790 = vxpose.xlu0.c.b16.end [8/8] 0, 128
        %v1791 = vpop.trf.xlu0
        %v1792 = vpop.trf.xlu0
        %v1793 = vpop.trf.xlu0
        %v1794 = vpop.trf.xlu0
        %v1795 = vpop.trf.xlu0
        %v1796 = vpop.trf.xlu0
        %v1797 = vpop.trf.xlu0
        %v1798 = vpop.trf.xlu0
        %1799 = vxpose.xlu0.c.b16.start [1/8] %v1761, 128
        %1800 = vxpose.xlu0.c.b16.cont [2/8] 0, 128
        %1801 = vxpose.xlu0.c.b16.cont [3/8] 0, 128
        %1802 = vxpose.xlu0.c.b16.cont [4/8] 0, 128
        %1803 = vxpose.xlu0.c.b16.cont [5/8] 0, 128
        %1804 = vxpose.xlu0.c.b16.cont [6/8] 0, 128
        %1805 = vxpose.xlu0.c.b16.cont [7/8] 0, 128
        %1806 = vxpose.xlu0.c.b16.end [8/8] 0, 128
        %v1807 = vpop.trf.xlu0
        %v1808 = vpop.trf.xlu0
        %v1809 = vpop.trf.xlu0
        %v1810 = vpop.trf.xlu0
        %v1811 = vpop.trf.xlu0
        %v1812 = vpop.trf.xlu0
        %v1813 = vpop.trf.xlu0
        %v1814 = vpop.trf.xlu0
        %1815 = vxpose.xlu0.c.b16.start [1/8] %v1762, 128
        %1816 = vxpose.xlu0.c.b16.cont [2/8] 0, 128
        %1817 = vxpose.xlu0.c.b16.cont [3/8] 0, 128
        %1818 = vxpose.xlu0.c.b16.cont [4/8] 0, 128
        %1819 = vxpose.xlu0.c.b16.cont [5/8] 0, 128
        %1820 = vxpose.xlu0.c.b16.cont [6/8] 0, 128
        %1821 = vxpose.xlu0.c.b16.cont [7/8] 0, 128
        %1822 = vxpose.xlu0.c.b16.end [8/8] 0, 128
        %v1823 = vpop.trf.xlu0
        %v1824 = vpop.trf.xlu0
        %v1825 = vpop.trf.xlu0
        %v1826 = vpop.trf.xlu0
        %v1827 = vpop.trf.xlu0
        %v1828 = vpop.trf.xlu0
        %v1829 = vpop.trf.xlu0
        %v1830 = vpop.trf.xlu0
        %v1832 = vsel %vm1152, %v1715, 0
        %1834 = vmatpush.bf16.msra.mxu0 0
        %1835 = vmatpush.bf16.msra.mxu0 0
        %1836 = vmatpush.bf16.msra.mxu0 0
        %1837 = vmatpush.bf16.msra.mxu0 0
        %1838 = vmatpush.bf16.msra.mxu0 0
        %1839 = vmatpush.bf16.msra.mxu0 0
        %1840 = vmatpush.bf16.msra.mxu0 %v1776
        %1841 = vmatpush.bf16.msra.mxu0 %v1775
        %1842 = vmatmul.bf16.gmra.mxu0 %v1832
        %v1843 = vpop.f32.mrf.mxu0
        %v1844 = vadd.f32 0.0, %v1843
        %v1845 = vpop.f32.mrf.mxu0
        %1846 = vdwg.mxu0
        %v1848 = vsel %vm1152, %v1716, 0
        %1850 = vmatpush.bf16.msra.mxu0 0
        %1851 = vmatpush.bf16.msra.mxu0 0
        %1852 = vmatpush.bf16.msra.mxu0 0
        %1853 = vmatpush.bf16.msra.mxu0 0
        %1854 = vmatpush.bf16.msra.mxu0 0
        %1855 = vmatpush.bf16.msra.mxu0 0
        %1856 = vmatpush.bf16.msra.mxu0 %v1792
        %1857 = vmatpush.bf16.msra.mxu0 %v1791
        %1858 = vmatmul.bf16.gmra.mxu0 %v1848
        %v1859 = vpop.f32.mrf.mxu0
        %v1860 = vadd.f32 0.0, %v1859
        %v1861 = vpop.f32.mrf.mxu0
        %1862 = vdwg.mxu0
        %v1864 = vsel %vm1152, %v1717, 0
        %1866 = vmatpush.bf16.msra.mxu0 0
        %1867 = vmatpush.bf16.msra.mxu0 0
        %1868 = vmatpush.bf16.msra.mxu0 0
        %1869 = vmatpush.bf16.msra.mxu0 0
        %1870 = vmatpush.bf16.msra.mxu0 0
        %1871 = vmatpush.bf16.msra.mxu0 0
        %1872 = vmatpush.bf16.msra.mxu0 %v1808
        %1873 = vmatpush.bf16.msra.mxu0 %v1807
        %1874 = vmatmul.bf16.gmra.mxu0 %v1864
        %v1875 = vpop.f32.mrf.mxu0
        %v1876 = vadd.f32 0.0, %v1875
        %v1877 = vpop.f32.mrf.mxu0
        %1878 = vdwg.mxu0
        %v1880 = vsel %vm1152, %v1718, 0
        %1882 = vmatpush.bf16.msra.mxu0 0
        %1883 = vmatpush.bf16.msra.mxu0 0
        %1884 = vmatpush.bf16.msra.mxu0 0
        %1885 = vmatpush.bf16.msra.mxu0 0
        %1886 = vmatpush.bf16.msra.mxu0 0
        %1887 = vmatpush.bf16.msra.mxu0 0
        %1888 = vmatpush.bf16.msra.mxu0 %v1824
        %1889 = vmatpush.bf16.msra.mxu0 %v1823
        %1890 = vmatmul.bf16.gmra.mxu0 %v1880
        %v1891 = vpop.f32.mrf.mxu0
        %v1892 = vadd.f32 0.0, %v1891
        %v1893 = vpop.f32.mrf.mxu0
        %1894 = vdwg.mxu0
        %v1895 = vsel %vm1032, 1, 0
        %vm1896 = vcmp.eq.s32.totalorder %v1895, 1
        %vm1897 = vmor 1, %vm1896
        %vm1898 = vmor 0, %vm1896
        %v1899 = vsel %vm1897, %v1844, -1e+30
        %v1900 = vsel %vm1897, %v1860, -1e+30
        %v1901 = vsel %vm1898, %v1876, -1e+30
        %v1902 = vsel %vm1898, %v1892, -1e+30
        %v1903 = vsel %vm1217, %v1899, -inf
        %1904 = vmax.xlane.f32.xlu0 %v1903
        %v1905 = vpop.xlane.xlu0 %1904
        %v1906 = vsel %vm1217, %v1900, -inf
        %1907 = vmax.xlane.f32.xlu0 %v1906
        %v1908 = vpop.xlane.xlu0 %1907
        %v1909 = vsel %vm1217, %v1901, -inf
        %1910 = vmax.xlane.f32.xlu0 %v1909
        %v1911 = vpop.xlane.xlu0 %1910
        %v1912 = vsel %vm1217, %v1902, -inf
        %1913 = vmax.xlane.f32.xlu0 %v1912
        %v1914 = vpop.xlane.xlu0 %1913
        %v1915 = vsub.f32 %v1899, %v1905
        %v1916 = vsub.f32 %v1900, %v1908
        %v1917 = vsub.f32 %v1901, %v1911
        %v1918 = vsub.f32 %v1902, %v1914
        %v1919 = vmul.f32 %v1915, 1.442695
        %v1920 = vpow.pop %v1919
        %v1921 = vmul.f32 %v1916, 1.442695
        %v1922 = vpow.pop %v1921
        %v1923 = vmul.f32 %v1917, 1.442695
        %v1924 = vpow.pop %v1923
        %v1925 = vmul.f32 %v1918, 1.442695
        %v1926 = vpow.pop %v1925
        %v1927 = vsel %vm1217, %v1920, 0.0
        %1928 = vadd.xlane.f32.xlu0 %v1927
        %v1929 = vpop.xlane.xlu0 %1928
        %v1930 = vsel %vm1217, %v1922, 0.0
        %1931 = vadd.xlane.f32.xlu0 %v1930
        %v1932 = vpop.xlane.xlu0 %1931
        %v1933 = vsel %vm1217, %v1924, 0.0
        %1934 = vadd.xlane.f32.xlu0 %v1933
        %v1935 = vpop.xlane.xlu0 %1934
        %v1936 = vsel %vm1217, %v1926, 0.0
        %1937 = vadd.xlane.f32.xlu0 %v1936
        %v1938 = vpop.xlane.xlu0 %1937
        %v1939 = vrcp.pop %v1929
        %v1940 = vrcp.pop %v1932
        %v1941 = vrcp.pop %v1935
        %v1942 = vrcp.pop %v1938
        %v1943 = vmul.f32 %v1920, %v1939
        %v1944 = vmul.f32 %v1922, %v1940
        %v1945 = vmul.f32 %v1924, %v1941
        %v1946 = vmul.f32 %v1926, %v1942
        %v1947 = vpack.c.bf16 %v1943, %v1943
        %v1948 = vpack.c.bf16 %v1944, %v1944
        %v1949 = vpack.c.bf16 %v1945, %v1945
        %v1950 = vpack.c.bf16 %v1946, %v1946
        %v1951 = vunpack.c.l.b16 %v1735
        %v1952 = vunpack.c.l.b16 %v1736
        %v1953 = vunpack.c.l.b16 %v1740
        %v1954 = vunpack.c.l.b16 %v1742
        %v1955 = vunpack.c.l.b16 %v1744
        %v1956 = vunpack.c.l.b16 %v1746
        %v1957 = vunpack.c.l.b16 %v1748
        %v1958 = vunpack.c.l.b16 %v1750
        %v1959 = vpack.c.b16 %v1952, %v1951
        %v1960 = vpack.c.b16 %v1954, %v1953
        %v1961 = vpack.c.b16 %v1956, %v1955
        %v1962 = vpack.c.b16 %v1958, %v1957
        %1967 = vxpose.xlu0.c.b16.start [1/8] %v1959, 128
        %1968 = vxpose.xlu0.c.b16.cont [2/8] 0, 128
        %1969 = vxpose.xlu0.c.b16.cont [3/8] 0, 128
        %1970 = vxpose.xlu0.c.b16.cont [4/8] 0, 128
        %1971 = vxpose.xlu0.c.b16.cont [5/8] 0, 128
        %1972 = vxpose.xlu0.c.b16.cont [6/8] 0, 128
        %1973 = vxpose.xlu0.c.b16.cont [7/8] 0, 128
        %1974 = vxpose.xlu0.c.b16.end [8/8] 0, 128
        %v1975 = vpop.trf.xlu0
        %v1976 = vpop.trf.xlu0
        %v1977 = vpop.trf.xlu0
        %v1978 = vpop.trf.xlu0
        %v1979 = vpop.trf.xlu0
        %v1980 = vpop.trf.xlu0
        %v1981 = vpop.trf.xlu0
        %v1982 = vpop.trf.xlu0
        %1983 = vxpose.xlu0.c.b16.start [1/8] %v1960, 128
        %1984 = vxpose.xlu0.c.b16.cont [2/8] 0, 128
        %1985 = vxpose.xlu0.c.b16.cont [3/8] 0, 128
        %1986 = vxpose.xlu0.c.b16.cont [4/8] 0, 128
        %1987 = vxpose.xlu0.c.b16.cont [5/8] 0, 128
        %1988 = vxpose.xlu0.c.b16.cont [6/8] 0, 128
        %1989 = vxpose.xlu0.c.b16.cont [7/8] 0, 128
        %1990 = vxpose.xlu0.c.b16.end [8/8] 0, 128
        %v1991 = vpop.trf.xlu0
        %v1992 = vpop.trf.xlu0
        %v1993 = vpop.trf.xlu0
        %v1994 = vpop.trf.xlu0
        %v1995 = vpop.trf.xlu0
        %v1996 = vpop.trf.xlu0
        %v1997 = vpop.trf.xlu0
        %v1998 = vpop.trf.xlu0
        %1999 = vxpose.xlu0.c.b16.start [1/8] %v1961, 128
        %2000 = vxpose.xlu0.c.b16.cont [2/8] 0, 128
        %2001 = vxpose.xlu0.c.b16.cont [3/8] 0, 128
        %2002 = vxpose.xlu0.c.b16.cont [4/8] 0, 128
        %2003 = vxpose.xlu0.c.b16.cont [5/8] 0, 128
        %2004 = vxpose.xlu0.c.b16.cont [6/8] 0, 128
        %2005 = vxpose.xlu0.c.b16.cont [7/8] 0, 128
        %2006 = vxpose.xlu0.c.b16.end [8/8] 0, 128
        %v2007 = vpop.trf.xlu0
        %v2008 = vpop.trf.xlu0
        %v2009 = vpop.trf.xlu0
        %v2010 = vpop.trf.xlu0
        %v2011 = vpop.trf.xlu0
        %v2012 = vpop.trf.xlu0
        %v2013 = vpop.trf.xlu0
        %v2014 = vpop.trf.xlu0
        %2015 = vxpose.xlu0.c.b16.start [1/8] %v1962, 128
        %2016 = vxpose.xlu0.c.b16.cont [2/8] 0, 128
        %2017 = vxpose.xlu0.c.b16.cont [3/8] 0, 128
        %2018 = vxpose.xlu0.c.b16.cont [4/8] 0, 128
        %2019 = vxpose.xlu0.c.b16.cont [5/8] 0, 128
        %2020 = vxpose.xlu0.c.b16.cont [6/8] 0, 128
        %2021 = vxpose.xlu0.c.b16.cont [7/8] 0, 128
        %2022 = vxpose.xlu0.c.b16.end [8/8] 0, 128
        %v2023 = vpop.trf.xlu0
        %v2024 = vpop.trf.xlu0
        %v2025 = vpop.trf.xlu0
        %v2026 = vpop.trf.xlu0
        %v2027 = vpop.trf.xlu0
        %v2028 = vpop.trf.xlu0
        %v2029 = vpop.trf.xlu0
        %v2030 = vpop.trf.xlu0
        %v2032 = vsel %vm1217, %v1975, 0
        %v2035 = vsel %vm1217, %v1976, 0
        %v2038 = vsel %vm1217, %v1947, 0
        %2040 = vmatpush.bf16.xpose.msra.mxu0 0
        %2041 = vmatpush.bf16.xpose.msra.mxu0 0
        %2042 = vmatpush.bf16.xpose.msra.mxu0 0
        %2043 = vmatpush.bf16.xpose.msra.mxu0 0
        %2044 = vmatpush.bf16.xpose.msra.mxu0 0
        %2045 = vmatpush.bf16.xpose.msra.mxu0 0
        %2046 = vmatpush.bf16.xpose.msra.mxu0 0
        %2047 = vmatpush.bf16.xpose.msra.mxu0 %v2038
        %2048 = vmatmul.bf16.gmra.mxu0 %v2032
        %v2049 = vpop.f32.mrf.mxu0
        %v2050 = vadd.f32 0.0, %v2049
        %v2051 = vpop.f32.mrf.mxu0
        %v2052 = vadd.f32 0.0, %v2051
        %2053 = vmatmul.bf16.gmra.mxu0 %v2035
        %v2054 = vpop.f32.mrf.mxu0
        %v2055 = vadd.f32 0.0, %v2054
        %v2056 = vpop.f32.mrf.mxu0
        %v2057 = vadd.f32 0.0, %v2056
        %2058 = vdwg.mxu0
        %v2060 = vsel %vm1217, %v1991, 0
        %v2063 = vsel %vm1217, %v1992, 0
        %v2066 = vsel %vm1217, %v1948, 0
        %2068 = vmatpush.bf16.xpose.msra.mxu0 0
        %2069 = vmatpush.bf16.xpose.msra.mxu0 0
        %2070 = vmatpush.bf16.xpose.msra.mxu0 0
        %2071 = vmatpush.bf16.xpose.msra.mxu0 0
        %2072 = vmatpush.bf16.xpose.msra.mxu0 0
        %2073 = vmatpush.bf16.xpose.msra.mxu0 0
        %2074 = vmatpush.bf16.xpose.msra.mxu0 0
        %2075 = vmatpush.bf16.xpose.msra.mxu0 %v2066
        %2076 = vmatmul.bf16.gmra.mxu0 %v2060
        %v2077 = vpop.f32.mrf.mxu0
        %v2078 = vadd.f32 0.0, %v2077
        %v2079 = vpop.f32.mrf.mxu0
        %v2080 = vadd.f32 0.0, %v2079
        %2081 = vmatmul.bf16.gmra.mxu0 %v2063
        %v2082 = vpop.f32.mrf.mxu0
        %v2083 = vadd.f32 0.0, %v2082
        %v2084 = vpop.f32.mrf.mxu0
        %v2085 = vadd.f32 0.0, %v2084
        %2086 = vdwg.mxu0
        %v2088 = vsel %vm1217, %v2007, 0
        %v2091 = vsel %vm1217, %v2008, 0
        %v2094 = vsel %vm1217, %v1949, 0
        %2096 = vmatpush.bf16.xpose.msra.mxu0 0
        %2097 = vmatpush.bf16.xpose.msra.mxu0 0
        %2098 = vmatpush.bf16.xpose.msra.mxu0 0
        %2099 = vmatpush.bf16.xpose.msra.mxu0 0
        %2100 = vmatpush.bf16.xpose.msra.mxu0 0
        %2101 = vmatpush.bf16.xpose.msra.mxu0 0
        %2102 = vmatpush.bf16.xpose.msra.mxu0 0
        %2103 = vmatpush.bf16.xpose.msra.mxu0 %v2094
        %2104 = vmatmul.bf16.gmra.mxu0 %v2088
        %v2105 = vpop.f32.mrf.mxu0
        %v2106 = vadd.f32 0.0, %v2105
        %v2107 = vpop.f32.mrf.mxu0
        %v2108 = vadd.f32 0.0, %v2107
        %2109 = vmatmul.bf16.gmra.mxu0 %v2091
        %v2110 = vpop.f32.mrf.mxu0
        %v2111 = vadd.f32 0.0, %v2110
        %v2112 = vpop.f32.mrf.mxu0
        %v2113 = vadd.f32 0.0, %v2112
        %2114 = vdwg.mxu0
        %v2116 = vsel %vm1217, %v2023, 0
        %v2119 = vsel %vm1217, %v2024, 0
        %v2122 = vsel %vm1217, %v1950, 0
        %2124 = vmatpush.bf16.xpose.msra.mxu0 0
        %2125 = vmatpush.bf16.xpose.msra.mxu0 0
        %2126 = vmatpush.bf16.xpose.msra.mxu0 0
        %2127 = vmatpush.bf16.xpose.msra.mxu0 0
        %2128 = vmatpush.bf16.xpose.msra.mxu0 0
        %2129 = vmatpush.bf16.xpose.msra.mxu0 0
        %2130 = vmatpush.bf16.xpose.msra.mxu0 0
        %2131 = vmatpush.bf16.xpose.msra.mxu0 %v2122
        %2132 = vmatmul.bf16.gmra.mxu0 %v2116
        %v2133 = vpop.f32.mrf.mxu0
        %v2134 = vadd.f32 0.0, %v2133
        %v2135 = vpop.f32.mrf.mxu0
        %v2136 = vadd.f32 0.0, %v2135
        %2137 = vmatmul.bf16.gmra.mxu0 %v2119
        %v2138 = vpop.f32.mrf.mxu0
        %v2139 = vadd.f32 0.0, %v2138
        %v2140 = vpop.f32.mrf.mxu0
        %v2141 = vadd.f32 0.0, %v2140
        %2142 = vdwg.mxu0
        %2143 = vxpose.xlu0.b32.start [1/16] %v2050, 128
        %2144 = vxpose.xlu0.b32.cont [2/16] %v2052, 128
        %2145 = vxpose.xlu0.b32.cont [3/16] %v2055, 128
        %2146 = vxpose.xlu0.b32.cont [4/16] %v2057, 128
        %2147 = vxpose.xlu0.b32.cont [5/16] 0.0, 128
        %2148 = vxpose.xlu0.b32.cont [6/16] 0.0, 128
        %2149 = vxpose.xlu0.b32.cont [7/16] 0.0, 128
        %2150 = vxpose.xlu0.b32.cont [8/16] 0.0, 128
        %2151 = vxpose.xlu0.b32.cont [9/16] 0.0, 128
        %2152 = vxpose.xlu0.b32.cont [10/16] 0.0, 128
        %2153 = vxpose.xlu0.b32.cont [11/16] 0.0, 128
        %2154 = vxpose.xlu0.b32.cont [12/16] 0.0, 128
        %2155 = vxpose.xlu0.b32.cont [13/16] 0.0, 128
        %2156 = vxpose.xlu0.b32.cont [14/16] 0.0, 128
        %2157 = vxpose.xlu0.b32.cont [15/16] 0.0, 128
        %2158 = vxpose.xlu0.b32.end [16/16] 0.0, 128
        %v2159 = vpop.trf.xlu0
        %v2160 = vpop.trf.xlu0
        %v2161 = vpop.trf.xlu0
        %v2162 = vpop.trf.xlu0
        %v2163 = vpop.trf.xlu0
        %v2164 = vpop.trf.xlu0
        %v2165 = vpop.trf.xlu0
        %v2166 = vpop.trf.xlu0
        %v2167 = vpop.trf.xlu0
        %v2168 = vpop.trf.xlu0
        %v2169 = vpop.trf.xlu0
        %v2170 = vpop.trf.xlu0
        %v2171 = vpop.trf.xlu0
        %v2172 = vpop.trf.xlu0
        %v2173 = vpop.trf.xlu0
        %v2174 = vpop.trf.xlu0
        %2175 = vxpose.xlu0.b32.start [1/16] %v2078, 128
        %2176 = vxpose.xlu0.b32.cont [2/16] %v2080, 128
        %2177 = vxpose.xlu0.b32.cont [3/16] %v2083, 128
        %2178 = vxpose.xlu0.b32.cont [4/16] %v2085, 128
        %2179 = vxpose.xlu0.b32.cont [5/16] 0.0, 128
        %2180 = vxpose.xlu0.b32.cont [6/16] 0.0, 128
        %2181 = vxpose.xlu0.b32.cont [7/16] 0.0, 128
        %2182 = vxpose.xlu0.b32.cont [8/16] 0.0, 128
        %2183 = vxpose.xlu0.b32.cont [9/16] 0.0, 128
        %2184 = vxpose.xlu0.b32.cont [10/16] 0.0, 128
        %2185 = vxpose.xlu0.b32.cont [11/16] 0.0, 128
        %2186 = vxpose.xlu0.b32.cont [12/16] 0.0, 128
        %2187 = vxpose.xlu0.b32.cont [13/16] 0.0, 128
        %2188 = vxpose.xlu0.b32.cont [14/16] 0.0, 128
        %2189 = vxpose.xlu0.b32.cont [15/16] 0.0, 128
        %2190 = vxpose.xlu0.b32.end [16/16] 0.0, 128
        %v2191 = vpop.trf.xlu0
        %v2192 = vpop.trf.xlu0
        %v2193 = vpop.trf.xlu0
        %v2194 = vpop.trf.xlu0
        %v2195 = vpop.trf.xlu0
        %v2196 = vpop.trf.xlu0
        %v2197 = vpop.trf.xlu0
        %v2198 = vpop.trf.xlu0
        %v2199 = vpop.trf.xlu0
        %v2200 = vpop.trf.xlu0
        %v2201 = vpop.trf.xlu0
        %v2202 = vpop.trf.xlu0
        %v2203 = vpop.trf.xlu0
        %v2204 = vpop.trf.xlu0
        %v2205 = vpop.trf.xlu0
        %v2206 = vpop.trf.xlu0
        %2207 = vxpose.xlu0.b32.start [1/16] %v2106, 128
        %2208 = vxpose.xlu0.b32.cont [2/16] %v2108, 128
        %2209 = vxpose.xlu0.b32.cont [3/16] %v2111, 128
        %2210 = vxpose.xlu0.b32.cont [4/16] %v2113, 128
        %2211 = vxpose.xlu0.b32.cont [5/16] 0.0, 128
        %2212 = vxpose.xlu0.b32.cont [6/16] 0.0, 128
        %2213 = vxpose.xlu0.b32.cont [7/16] 0.0, 128
        %2214 = vxpose.xlu0.b32.cont [8/16] 0.0, 128
        %2215 = vxpose.xlu0.b32.cont [9/16] 0.0, 128
        %2216 = vxpose.xlu0.b32.cont [10/16] 0.0, 128
        %2217 = vxpose.xlu0.b32.cont [11/16] 0.0, 128
        %2218 = vxpose.xlu0.b32.cont [12/16] 0.0, 128
        %2219 = vxpose.xlu0.b32.cont [13/16] 0.0, 128
        %2220 = vxpose.xlu0.b32.cont [14/16] 0.0, 128
        %2221 = vxpose.xlu0.b32.cont [15/16] 0.0, 128
        %2222 = vxpose.xlu0.b32.end [16/16] 0.0, 128
        %v2223 = vpop.trf.xlu0
        %v2224 = vpop.trf.xlu0
        %v2225 = vpop.trf.xlu0
        %v2226 = vpop.trf.xlu0
        %v2227 = vpop.trf.xlu0
        %v2228 = vpop.trf.xlu0
        %v2229 = vpop.trf.xlu0
        %v2230 = vpop.trf.xlu0
        %v2231 = vpop.trf.xlu0
        %v2232 = vpop.trf.xlu0
        %v2233 = vpop.trf.xlu0
        %v2234 = vpop.trf.xlu0
        %v2235 = vpop.trf.xlu0
        %v2236 = vpop.trf.xlu0
        %v2237 = vpop.trf.xlu0
        %v2238 = vpop.trf.xlu0
        %2239 = vxpose.xlu0.b32.start [1/16] %v2134, 128
        %2240 = vxpose.xlu0.b32.cont [2/16] %v2136, 128
        %2241 = vxpose.xlu0.b32.cont [3/16] %v2139, 128
        %2242 = vxpose.xlu0.b32.cont [4/16] %v2141, 128
        %2243 = vxpose.xlu0.b32.cont [5/16] 0.0, 128
        %2244 = vxpose.xlu0.b32.cont [6/16] 0.0, 128
        %2245 = vxpose.xlu0.b32.cont [7/16] 0.0, 128
        %2246 = vxpose.xlu0.b32.cont [8/16] 0.0, 128
        %2247 = vxpose.xlu0.b32.cont [9/16] 0.0, 128
        %2248 = vxpose.xlu0.b32.cont [10/16] 0.0, 128
        %2249 = vxpose.xlu0.b32.cont [11/16] 0.0, 128
        %2250 = vxpose.xlu0.b32.cont [12/16] 0.0, 128
        %2251 = vxpose.xlu0.b32.cont [13/16] 0.0, 128
        %2252 = vxpose.xlu0.b32.cont [14/16] 0.0, 128
        %2253 = vxpose.xlu0.b32.cont [15/16] 0.0, 128
        %2254 = vxpose.xlu0.b32.end [16/16] 0.0, 128
        %v2255 = vpop.trf.xlu0
        %v2256 = vpop.trf.xlu0
        %v2257 = vpop.trf.xlu0
        %v2258 = vpop.trf.xlu0
        %v2259 = vpop.trf.xlu0
        %v2260 = vpop.trf.xlu0
        %v2261 = vpop.trf.xlu0
        %v2262 = vpop.trf.xlu0
        %v2263 = vpop.trf.xlu0
        %v2264 = vpop.trf.xlu0
        %v2265 = vpop.trf.xlu0
        %v2266 = vpop.trf.xlu0
        %v2267 = vpop.trf.xlu0
        %v2268 = vpop.trf.xlu0
        %v2269 = vpop.trf.xlu0
        %v2270 = vpop.trf.xlu0
        %v2271 = vrot.slane %v2223, 4
        %v2272 = vsel %vm1587, %v2271, %v2159
        %v2273 = vrot.slane %v2159, 4
        %v2274 = vsel %vm1587, %v2223, %v2273
        %v2276 = vunpack.c.l.s4 1983009808
        %v2277 = vunpack.c.0.s8 %v2276
        %v2278 = vperm.slane %v2272, %v2277
        %v2280 = vunpack.c.l.s4 1983009808
        %v2281 = vunpack.c.0.s8 %v2280
        %v2282 = vperm.slane %v2274, %v2281
        %v2283 = vrot.slane %v2255, 4
        %v2284 = vsel %vm1587, %v2283, %v2191
        %v2285 = vrot.slane %v2191, 4
        %v2286 = vsel %vm1587, %v2255, %v2285
        %v2288 = vunpack.c.l.s4 1983009808
        %v2289 = vunpack.c.0.s8 %v2288
        %v2290 = vperm.slane %v2284, %v2289
        %v2292 = vunpack.c.l.s4 1983009808
        %v2293 = vunpack.c.0.s8 %v2292
        %v2294 = vperm.slane %v2286, %v2293
        %v2295 = vrot.slane %v2290, 4
        %v2296 = vsel %vm1587, %v2295, %v2278
        %v2297 = vrot.slane %v2278, 4
        %v2298 = vsel %vm1587, %v2290, %v2297
        %v2300 = vunpack.c.l.s4 1934713408
        %v2301 = vunpack.c.0.s8 %v2300
        %v2302 = vperm.slane %v2296, %v2301
        %v2304 = vunpack.c.l.s4 1934713408
        %v2305 = vunpack.c.0.s8 %v2304
        %v2306 = vperm.slane %v2298, %v2305
        %v2307 = vrot.slane %v2294, 4
        %v2308 = vsel %vm1587, %v2307, %v2282
        %v2309 = vrot.slane %v2282, 4
        %v2310 = vsel %vm1587, %v2294, %v2309
        %v2312 = vunpack.c.l.s4 1934713408
        %v2313 = vunpack.c.0.s8 %v2312
        %v2314 = vperm.slane %v2308, %v2313
        %v2316 = vunpack.c.l.s4 1934713408
        %v2317 = vunpack.c.0.s8 %v2316
        %v2318 = vperm.slane %v2310, %v2317
        %v2319 = vrot.slane %v2302, 4
        %v2320 = vsel %vm1587, 0.0, %v2319
        %v2321 = vrot.slane %v2306, 4
        %v2322 = vsel %vm1587, 0.0, %v2321
        %v2323 = vrot.slane %v2314, 4
        %v2324 = vsel %vm1587, 0.0, %v2323
        %v2325 = vrot.slane %v2318, 4
        %v2326 = vsel %vm1587, 0.0, %v2325
        %v2327 = vsel %vm1587, %v2321, %v2302
        %v2329 = vunpack.c.l.s4 1983009808
        %v2330 = vunpack.c.0.s8 %v2329
        %v2331 = vperm.slane %v2327, %v2330
        %v2332 = vrot.slane %v2322, 4
        %v2333 = vsel %vm1587, %v2332, %v2320
        %v2335 = vunpack.c.l.s4 1983009808
        %v2336 = vunpack.c.0.s8 %v2335
        %v2337 = vperm.slane %v2333, %v2336
        %v2338 = vsel %vm1587, %v2325, %v2314
        %v2340 = vunpack.c.l.s4 1983009808
        %v2341 = vunpack.c.0.s8 %v2340
        %v2342 = vperm.slane %v2338, %v2341
        %v2343 = vrot.slane %v2326, 4
        %v2344 = vsel %vm1587, %v2343, %v2324
        %v2346 = vunpack.c.l.s4 1983009808
        %v2347 = vunpack.c.0.s8 %v2346
        %v2348 = vperm.slane %v2344, %v2347
        %v2349 = vrot.slane %v2337, 4
        %v2350 = vsel %vm1587, %v2349, %v2331
        %v2351 = vrot.slane %v2331, 4
        %v2352 = vsel %vm1587, %v2337, %v2351
        %v2354 = vunpack.c.l.s4 1934713408
        %v2355 = vunpack.c.0.s8 %v2354
        %v2356 = vperm.slane %v2350, %v2355
        %v2358 = vunpack.c.l.s4 1934713408
        %v2359 = vunpack.c.0.s8 %v2358
        %v2360 = vperm.slane %v2352, %v2359
        %v2361 = vrot.slane %v2348, 4
        %v2362 = vsel %vm1587, %v2361, %v2342
        %v2363 = vrot.slane %v2342, 4
        %v2364 = vsel %vm1587, %v2348, %v2363
        %v2366 = vunpack.c.l.s4 1934713408
        %v2367 = vunpack.c.0.s8 %v2366
        %v2368 = vperm.slane %v2362, %v2367
        %v2370 = vunpack.c.l.s4 1934713408
        %v2371 = vunpack.c.0.s8 %v2370
        %v2372 = vperm.slane %v2364, %v2371
        %v2373 = vrot.slane %v2368, 4
        %v2374 = vsel %vm1587, %v2373, %v2356
        %v2375 = vrot.slane %v2356, 4
        %v2376 = vsel %vm1587, %v2368, %v2375
        %v2377 = vrot.slane %v2372, 4
        %v2378 = vsel %vm1587, %v2377, %v2360
        %v2379 = vrot.slane %v2360, 4
        %v2380 = vsel %vm1587, %v2372, %v2379
        %2382 = vrot.lane.b32.xlu0 %v2376, 32
        %v2383 = vpop.permute.xlu0 %2382
        %2386 = vrot.lane.b32.xlu0 %v2378, 64
        %v2387 = vpop.permute.xlu0 %2386
        %2390 = vrot.lane.b32.xlu0 %v2380, 96
        %v2391 = vpop.permute.xlu0 %2390
        %v2393 = vsel %vm1152, %v2374, %v2383
        %v2394 = vsel %vm1710, %v2393, %v2387
        %v2395 = vsel %vm1712, %v2394, %v2391
        %2396 = vst [vmem:[%s235 + $0x8] sm:$0xff] %v2395
        %s2397 = sand.u32 %s111, 1
        %s2398 = scalar_lea.sflag [#allocation6], %s2397
        %s2399 = sand.u32 %s111, 1
        %s2400 = smul.addr %s2399, 16
        %s2401 = scalar_lea.vmem [#allocation10], %s2400
        // Predicated region
        $region49: #{long_axis_self_attention.1} parent=31 // pred_check
          %p2402 = pneg %p121
        $region50: #{long_axis_self_attention.1} parent=31 // pred_check_branch
          %2404 = sbr.rel (%p2402) target = $region52
        $region51: #{long_axis_self_attention.1} parent=31 // pred_region
          %2406 = vsyncadd %s2398, 0
          %s2407 = smul.addr %s26, 2
          %s2408 = smul.addr %s25, 4
          %s2409 = sadd.s32 %s2407, %s2408
          %s2410 = smul.addr %s2409, 8
          %s2411 = scalar_lea.hbm %s3, %s2410
          %s2413 = sshll.u32 %s2401, 4
          %s2414 = int_to_ptr.vmem [resolvable:$true] %s2413
          %s2415 = sshll.u32 %s2411, 4
          %s2416 = int_to_ptr.hbm [resolvable:$true] %s2415
          %2418 = dma.vmem_to_hbm [thread:$0]  %s2414, 256, %s2416, %s2398
        $region52: #{long_axis_self_attention.1} parent=31 // pred_fallthru
          _
      $region32: #{long_axis_self_attention.1} parent=5 // pred_fallthru
        _
      %p2419 = scmp.le.s32.totalorder 2, %s16
      // Predicated region
      $region53: #{long_axis_self_attention.1} parent=5 // pred_check
        %p2420 = pneg %p2419
      $region54: #{long_axis_self_attention.1} parent=5 // pred_check_branch
        %2422 = sbr.rel (%p2420) target = $region56
      $region55: #{long_axis_self_attention.1} parent=5 // pred_region
        %s2423 = ssub.s32 %s16, 2
        // Predicated region
        $region57: #{long_axis_self_attention.1} parent=55 // pred_check
          %p2424 = pneg %p127
        $region58: #{long_axis_self_attention.1} parent=55 // pred_check_branch
          %2426 = sbr.rel (%p2424) target = $region60
        $region59: #{long_axis_self_attention.1} parent=55 // pred_region
          %s2427 = sand.u32 %s112, 1
          %s2428 = scalar_lea.sflag [#allocation6], %s2427
          %s2429 = sand.u32 %s112, 1
          %s2430 = smul.addr %s2429, 16
          %s2431 = scalar_lea.vmem [#allocation10], %s2430
          %2433 = dma.done %s2428, 256
        $region60: #{long_axis_self_attention.1} parent=55 // pred_fallthru
          _
      $region56: #{long_axis_self_attention.1} parent=5 // pred_fallthru
        _
    $region6: #{long_axis_self_attention.1} parent=1 // loop_footer
      %s20 = sadd.s32 1, %s16
    $region7: #{long_axis_self_attention.1} parent=1 // loop_footer_branch
      %15 = sbr.rel target = $region3
    $region8: #{long_axis_self_attention.1} parent=1 // loop_exit
      _
    %2434 = vsyncpa [#allocation5], 1
    %s2435 = scalar_lea.sflag [#allocation5], 1
    %2436 = vsyncpa %s2435, 1
    %2437 = vsyncpa [#allocation8], 1
    %2438 = vsyncpa [#allocation6], 1
    %s2439 = scalar_lea.sflag [#allocation6], 1
    %2440 = vsyncpa %s2439, 1

</llo_original>
